<compile_context>
chip_gen: v7x
topology: tpu7x:2x2x1
jax: 0.10.0
libtpu: 0.0.40
codegen_flags: <defaults>
</compile_context>

<pallas_src>
import functools
import math

import jax
import jax.numpy as jnp
from jax import lax
from jax.experimental import pallas as pl
from jax.experimental.pallas import tpu as pltpu

EPS = 1e-5                      # nn.LayerNorm default eps
_VMEM_LIMIT = 32 * 1024 * 1024  # explicit scoped-VMEM budget (review item)


# ---------------------------------------------------------------------------
# Kernel A: packed QKV projection over flattened (B*S, H) rows
# ---------------------------------------------------------------------------
def _qkv_kernel(x_ref, w_ref, b_ref, o_ref):
    # [TM, H] @ [H, 3H] + [1, 3H] -> [TM, 3H]   (columns: [q | k | v])
    o_ref[...] = (jnp.dot(x_ref[...], w_ref[...],
                          preferred_element_type=jnp.float32) + b_ref[...])


# ---------------------------------------------------------------------------
# Kernel B: multi-head attention, heads batched in single dot_generals
# ---------------------------------------------------------------------------
def _attention_kernel(q_ref, k_ref, v_ref, o_ref, *, inv_scale):
    q = q_ref[...] * inv_scale          # [n_heads, S, hd] (scale folded into q)
    k = k_ref[...]
    v = v_ref[...]
    # energy[h] = Q_h @ K_h^T, all heads in one batched dot_general.
    energy = jnp.einsum("hqd,hkd->hqk", q, k,
                        preferred_element_type=jnp.float32)      # [h, S, S]
    energy = energy - jnp.max(energy, axis=-1, keepdims=True)
    p = jnp.exp(energy)
    # Exact reciprocal keeps the 1e-4 tolerance; approx=True would move the
    # divide onto the EUP once a looser tolerance is acceptable.
    attn = p * pl.reciprocal(jnp.sum(p, axis=-1, keepdims=True), approx=False)
    o_ref[...] = jnp.einsum("hqk,hkd->hqd", attn, v,
                            preferred_element_type=jnp.float32)  # [h, S, hd]


# ---------------------------------------------------------------------------
# Kernel C: fc_o + residual + LN1 + FFN(+ReLU) + residual + LN2 (row-tiled)
# ---------------------------------------------------------------------------
def _post_kernel(src_ref, ctx_ref, wo_ref, bo_ref, g1_ref, be1_ref,
                 w1_ref, b1_ref, w2_ref, b2_ref, g2_ref, be2_ref, o_ref):
    x = src_ref[...]                                             # [TM, H]
    attn_out = (jnp.dot(ctx_ref[...], wo_ref[...],
                        preferred_element_type=jnp.float32) + bo_ref[...])

    h1 = x + attn_out
    mu = jnp.mean(h1, axis=-1, keepdims=True)
    var = jnp.mean((h1 - mu) ** 2, axis=-1, keepdims=True)
    h1 = (h1 - mu) * lax.rsqrt(var + EPS) * g1_ref[...] + be1_ref[...]

    ff = jnp.dot(h1, w1_ref[...], preferred_element_type=jnp.float32) + b1_ref[...]
    ff = jnp.maximum(ff, 0.0)            # ReLU (dropout is identity in eval)
    ff = jnp.dot(ff, w2_ref[...], preferred_element_type=jnp.float32) + b2_ref[...]

    h2 = h1 + ff
    mu2 = jnp.mean(h2, axis=-1, keepdims=True)
    var2 = jnp.mean((h2 - mu2) ** 2, axis=-1, keepdims=True)
    o_ref[...] = (h2 - mu2) * lax.rsqrt(var2 + EPS) * g2_ref[...] + be2_ref[...]


# ---------------------------------------------------------------------------
# Wrapper
# ---------------------------------------------------------------------------
def pack_encoder_params(params):
    """Hoisted once per model: pack Q/K/V weights into one [H, 3H] operand."""
    return {
        "wqkv": jnp.concatenate([params["wq"], params["wk"], params["wv"]], axis=1),
        "bqkv": jnp.concatenate([params["bq"], params["bk"], params["bv"]], axis=1),
        "wo": params["wo"], "bo": params["bo"],
        "g1": params["g1"], "be1": params["be1"],
        "w1": params["w1"], "b1": params["b1"],
        "w2": params["w2"], "b2": params["b2"],
        "g2": params["g2"], "be2": params["be2"],
    }


def _row_tile(n, cap=512):
    if n <= cap:
        return n
    for t in range(cap, 0, -1):          # largest divisor of n that is <= cap
        if n % t == 0:
            return t
    return 1


@functools.partial(jax.jit, static_argnames=("n_heads",))
def encoder_layer(src, packed, n_heads):
    B, S, H = src.shape
    assert H % n_heads == 0
    hd = H // n_heads
    PF = packed["w1"].shape[1]
    f32 = jnp.float32

    N = B * S
    tm = _row_tile(N)
    x_flat = src.reshape(N, H)

    def full(shp):
        return pl.BlockSpec(shp, lambda i: (0,) * len(shp))

    row_spec = lambda c: pl.BlockSpec((tm, c), lambda i: (i, 0))
    cparams = pltpu.CompilerParams(dimension_semantics=("parallel",),
                                   vmem_limit_bytes=_VMEM_LIMIT)

    # ---- Kernel A: packed QKV projection over flattened rows ----------------
    qkv = pl.pallas_call(
        _qkv_kernel,
        out_shape=jax.ShapeDtypeStruct((N, 3 * H), f32),
        grid=(N // tm,),
        in_specs=[row_spec(H), full((H, 3 * H)), full((1, 3 * H))],
        out_specs=row_spec(3 * H),
        compiler_params=cparams,
    )(x_flat, packed["wqkv"], packed["bqkv"])

    # ---- head split: the module's raw `.view(B, n_heads, -1, hd)` -----------
    # (free XLA reshapes in the wrapper; no in-kernel layout work)
    q, k, v = jnp.split(qkv, 3, axis=-1)            # each [N, H]
    q4 = q.reshape(B, n_heads, S, hd)
    k4 = k.reshape(B, n_heads, S, hd)
    v4 = v.reshape(B, n_heads, S, hd)

    # ---- Kernel B: batched multi-head attention, grid over batch ------------
    head_spec = pl.BlockSpec((pl.Squeezed(), n_heads, S, hd),
                             lambda b: (b, 0, 0, 0))
    ctx4 = pl.pallas_call(
        functools.partial(_attention_kernel,
                          inv_scale=1.0 / math.sqrt(float(hd))),
        out_shape=jax.ShapeDtypeStruct((B, n_heads, S, hd), f32),
        grid=(B,),
        in_specs=[head_spec, head_spec, head_spec],
        out_specs=head_spec,
        compiler_params=cparams,
    )(q4, k4, v4)

    # ---- head merge: `.contiguous().view(B, -1, H)` (free wrapper reshape) --
    ctx = ctx4.reshape(N, H)

    # ---- Kernel C: fc_o + LN1 + FFN + LN2, row-tiled over (B*S, H) ----------
    out_flat = pl.pallas_call(
        _post_kernel,
        out_shape=jax.ShapeDtypeStruct((N, H), f32),
        grid=(N // tm,),
        in_specs=[row_spec(H), row_spec(H),
                  full((H, H)), full((1, H)),
                  full((1, H)), full((1, H)),
                  full((H, PF)), full((1, PF)),
                  full((PF, H)), full((1, H)),
                  full((1, H)), full((1, H))],
        out_specs=row_spec(H),
        compiler_params=cparams,
    )(x_flat, ctx, packed["wo"], packed["bo"], packed["g1"], packed["be1"],
      packed["w1"], packed["b1"], packed["w2"], packed["b2"],
      packed["g2"], packed["be2"])

    return out_flat.reshape(B, S, H)


# ---------------------------------------------------------------------------
# Pure-JAX reference (mirrors the PyTorch forward exactly)
# ---------------------------------------------------------------------------
def encoder_layer_ref(src, params, n_heads):
    B, S, H = src.shape
    hd = H // n_heads

    def ln(x, g, b):
        mu = jnp.mean(x, axis=-1, keepdims=True)
        var = jnp.mean((x - mu) ** 2, axis=-1, keepdims=True)
        return (x - mu) * jax.lax.rsqrt(var + EPS) * g + b

    q = src @ params["wq"] + params["bq"]
    k = src @ params["wk"] + params["bk"]
    v = src @ params["wv"] + params["bv"]
    qh = q.reshape(B, n_heads, -1, hd)     # raw view, as in the PyTorch module
    kh = k.reshape(B, n_heads, -1, hd)
    vh = v.reshape(B, n_heads, -1, hd)
    energy = jnp.einsum("bhqd,bhkd->bhqk", qh, kh) / (float(hd) ** 0.5)
    attn = jax.nn.softmax(energy, axis=-1)
    x = jnp.einsum("bhqk,bhkd->bhqd", attn, vh).reshape(B, -1, H)
    x = x @ params["wo"] + params["bo"]
    h = ln(src + x, params["g1"], params["be1"])
    ff = jnp.maximum(h @ params["w1"] + params["b1"], 0.0) @ params["w2"] + params["b2"]
    return ln(h + ff, params["g2"], params["be2"])


# ---------------------------------------------------------------------------
if __name__ == "__main__":
    B, S, H, N_HEADS, PF = 2, 8, 32, 4, 64  # hid_dim=32, n_heads=4, pf_dim=64

    key = jax.random.PRNGKey(0)
    ks = jax.random.split(key, 20)
    mk = lambda k, shp, s=0.1: (jax.random.normal(k, shp, jnp.float32) * s)

    params = {
        "wq": mk(ks[0], (H, H)),  "bq": mk(ks[1], (1, H)),
        "wk": mk(ks[2], (H, H)),  "bk": mk(ks[3], (1, H)),
        "wv": mk(ks[4], (H, H)),  "bv": mk(ks[5], (1, H)),
        "wo": mk(ks[6], (H, H)),  "bo": mk(ks[7], (1, H)),
        "g1": 1.0 + mk(ks[8], (1, H)),  "be1": mk(ks[9], (1, H)),
        "w1": mk(ks[10], (H, PF)), "b1": mk(ks[11], (1, PF)),
        "w2": mk(ks[12], (PF, H)), "b2": mk(ks[13], (1, H)),
        "g2": 1.0 + mk(ks[14], (1, H)), "be2": mk(ks[15], (1, H)),
    }
    src = jax.random.normal(ks[16], (B, S, H), jnp.float32)

    packed = pack_encoder_params(params)      # hoisted out of the call path

    out = jax.block_until_ready(encoder_layer(src, packed, N_HEADS))
    ref = jax.block_until_ready(encoder_layer_ref(src, params, N_HEADS))

    assert out.shape == (B, S, H)
    assert jnp.allclose(out, ref, atol=1e-4, rtol=1e-4), "mismatch vs reference"
    print("KERNEL_OK")
</pallas_src>

<mosaic_0001>
module attributes {stable_mosaic.version = 11 : i64} {
  func.func @_attention_kernel(%arg0: i32, %arg1: memref<1x4x8x8xf32, #tpu.memory_space<vmem>>, %arg2: memref<1x4x8x8xf32, #tpu.memory_space<vmem>>, %arg3: memref<1x4x8x8xf32, #tpu.memory_space<vmem>>, %arg4: memref<1x4x8x8xf32, #tpu.memory_space<vmem>>) attributes {dimension_semantics = [#tpu.dimension_semantics<parallel>], iteration_bounds = array<i64: 2>, scalar_prefetch = 0 : i64, scratch_operands = 0 : i64, tpu.core_type = #tpu.core_type<tc>, window_params = [{transform_indices = @transform_0, window_bounds = array<i64: 1, 4, 8, 8>}, {transform_indices = @transform_1, window_bounds = array<i64: 1, 4, 8, 8>}, {transform_indices = @transform_2, window_bounds = array<i64: 1, 4, 8, 8>}, {transform_indices = @transform_3, window_bounds = array<i64: 1, 4, 8, 8>}]} {
    %c0 = arith.constant 0 : index
    %c0_0 = arith.constant 0 : index
    %c0_1 = arith.constant 0 : index
    %c0_2 = arith.constant 0 : index
    %0 = vector.load %arg1[%c0, %c0_0, %c0_1, %c0_2] : memref<1x4x8x8xf32, #tpu.memory_space<vmem>>, vector<1x4x8x8xf32>
    %1 = vector.shape_cast %0 : vector<1x4x8x8xf32> to vector<4x8x8xf32>
    %cst = arith.constant 0.353553385 : f32
    %2 = vector.broadcast %cst : f32 to vector<4x8x8xf32>
    %3 = arith.mulf %1, %2 : vector<4x8x8xf32>
    %c0_3 = arith.constant 0 : index
    %c0_4 = arith.constant 0 : index
    %c0_5 = arith.constant 0 : index
    %c0_6 = arith.constant 0 : index
    %4 = vector.load %arg2[%c0_3, %c0_4, %c0_5, %c0_6] : memref<1x4x8x8xf32, #tpu.memory_space<vmem>>, vector<1x4x8x8xf32>
    %5 = vector.shape_cast %4 : vector<1x4x8x8xf32> to vector<4x8x8xf32>
    %c0_7 = arith.constant 0 : index
    %c0_8 = arith.constant 0 : index
    %c0_9 = arith.constant 0 : index
    %c0_10 = arith.constant 0 : index
    %6 = vector.load %arg3[%c0_7, %c0_8, %c0_9, %c0_10] : memref<1x4x8x8xf32, #tpu.memory_space<vmem>>, vector<1x4x8x8xf32>
    %7 = vector.shape_cast %6 : vector<1x4x8x8xf32> to vector<4x8x8xf32>
    "tpu.trace_start"() <{level = 10 : i32, message = "hqd,hkd->hqk"}> : () -> ()
    %cst_11 = arith.constant dense<0.000000e+00> : vector<4x8x8xf32>
    %8 = tpu.matmul %3, %5, %cst_11 {dimension_numbers = #tpu.dot_dimension_numbers<[2], [2], [1], [1], [0, 0, 0, 1, 1, 1], [0], [0]>} : vector<4x8x8xf32>, vector<4x8x8xf32>, vector<4x8x8xf32> -> vector<4x8x8xf32>
    "tpu.trace_stop"() : () -> ()
    %cst_12 = arith.constant dense<0xFF800000> : vector<4x8xf32>
    %9 = vector.multi_reduction <maximumf>, %8, %cst_12 [2] : vector<4x8x8xf32> to vector<4x8xf32>
    %10 = vector.shape_cast %9 : vector<4x8xf32> to vector<4x8x1xf32>
    %11 = vector.broadcast %10 : vector<4x8x1xf32> to vector<4x8x8xf32>
    %12 = arith.subf %8, %11 : vector<4x8x8xf32>
    %13 = math.exp %12 : vector<4x8x8xf32>
    %cst_13 = arith.constant dense<0.000000e+00> : vector<4x8xf32>
    %14 = vector.multi_reduction <add>, %13, %cst_13 [2] : vector<4x8x8xf32> to vector<4x8xf32>
    %15 = vector.shape_cast %14 : vector<4x8xf32> to vector<4x8x1xf32>
    %16 = tpu.reciprocal %15 : vector<4x8x1xf32> -> vector<4x8x1xf32>
    %17 = vector.broadcast %16 : vector<4x8x1xf32> to vector<4x8x8xf32>
    %18 = arith.mulf %13, %17 : vector<4x8x8xf32>
    "tpu.trace_start"() <{level = 10 : i32, message = "hqk,hkd->hqd"}> : () -> ()
    %cst_14 = arith.constant dense<0.000000e+00> : vector<4x8x8xf32>
    %19 = tpu.matmul %18, %7, %cst_14 {dimension_numbers = #tpu.dot_dimension_numbers<[2], [1], [1], [2], [0, 0, 0, 1, 1, 2], [0], [0]>} : vector<4x8x8xf32>, vector<4x8x8xf32>, vector<4x8x8xf32> -> vector<4x8x8xf32>
    "tpu.trace_stop"() : () -> ()
    %c0_15 = arith.constant 0 : index
    %c0_16 = arith.constant 0 : index
    %c0_17 = arith.constant 0 : index
    %c0_18 = arith.constant 0 : index
    %20 = vector.load %arg4[%c0_15, %c0_16, %c0_17, %c0_18] : memref<1x4x8x8xf32, #tpu.memory_space<vmem>>, vector<1x4x8x8xf32>
    %21 = vector.shape_cast %20 : vector<1x4x8x8xf32> to vector<4x8x8xf32>
    %22 = vector.shape_cast %19 : vector<4x8x8xf32> to vector<1x4x8x8xf32>
    tpu.vector_store %arg4[%c0_15, %c0_16, %c0_17, %c0_18], %22 {strides = array<i32>} : memref<1x4x8x8xf32, #tpu.memory_space<vmem>>, vector<1x4x8x8xf32>,
    return
  }
  func.func @transform_0(%arg0: i32) -> (i32, i32, i32, i32) {
    %c0_i32 = arith.constant 0 : i32
    %c0_i32_0 = arith.constant 0 : i32
    %c0_i32_1 = arith.constant 0 : i32
    %c0_i32_2 = arith.constant 0 : i32
    return %arg0, %c0_i32, %c0_i32_0, %c0_i32_1 : i32, i32, i32, i32
  }
  func.func @transform_1(%arg0: i32) -> (i32, i32, i32, i32) {
    %c0_i32 = arith.constant 0 : i32
    %c0_i32_0 = arith.constant 0 : i32
    %c0_i32_1 = arith.constant 0 : i32
    %c0_i32_2 = arith.constant 0 : i32
    return %arg0, %c0_i32, %c0_i32_0, %c0_i32_1 : i32, i32, i32, i32
  }
  func.func @transform_2(%arg0: i32) -> (i32, i32, i32, i32) {
    %c0_i32 = arith.constant 0 : i32
    %c0_i32_0 = arith.constant 0 : i32
    %c0_i32_1 = arith.constant 0 : i32
    %c0_i32_2 = arith.constant 0 : i32
    return %arg0, %c0_i32, %c0_i32_0, %c0_i32_1 : i32, i32, i32, i32
  }
  func.func @transform_3(%arg0: i32) -> (i32, i32, i32, i32) {
    %c0_i32 = arith.constant 0 : i32
    %c0_i32_0 = arith.constant 0 : i32
    %c0_i32_1 = arith.constant 0 : i32
    %c0_i32_2 = arith.constant 0 : i32
    return %arg0, %c0_i32, %c0_i32_0, %c0_i32_1 : i32, i32, i32, i32
  }
}

module attributes {stable_mosaic.version = 11 : i64} {
  func.func @_qkv_kernel(%arg0: i32, %arg1: memref<16x32xf32, #tpu.memory_space<vmem>>, %arg2: memref<32x96xf32, #tpu.memory_space<vmem>>, %arg3: memref<1x96xf32, #tpu.memory_space<vmem>>, %arg4: memref<16x96xf32, #tpu.memory_space<vmem>>) attributes {dimension_semantics = [#tpu.dimension_semantics<parallel>], iteration_bounds = array<i64: 1>, scalar_prefetch = 0 : i64, scratch_operands = 0 : i64, tpu.core_type = #tpu.core_type<tc>, window_params = [{transform_indices = @transform_0, window_bounds = array<i64: 16, 32>}, {pipeline_mode = #tpu.pipeline_mode<synchronous>, transform_indices = @transform_1, window_bounds = array<i64: 32, 96>}, {pipeline_mode = #tpu.pipeline_mode<synchronous>, transform_indices = @transform_2, window_bounds = array<i64: 1, 96>}, {transform_indices = @transform_3, window_bounds = array<i64: 16, 96>}]} {
    %c0 = arith.constant 0 : index
    %c0_0 = arith.constant 0 : index
    %0 = vector.load %arg1[%c0, %c0_0] : memref<16x32xf32, #tpu.memory_space<vmem>>, vector<16x32xf32>
    %c0_1 = arith.constant 0 : index
    %c0_2 = arith.constant 0 : index
    %1 = vector.load %arg2[%c0_1, %c0_2] : memref<32x96xf32, #tpu.memory_space<vmem>>, vector<32x96xf32>
    %cst = arith.constant dense<0.000000e+00> : vector<16x96xf32>
    %2 = tpu.matmul %0, %1, %cst {dimension_numbers = #tpu.dot_dimension_numbers<[1], [0], [0], [1], [0, 0, 1, 1], [], []>} : vector<16x32xf32>, vector<32x96xf32>, vector<16x96xf32> -> vector<16x96xf32>
    %c0_3 = arith.constant 0 : index
    %c0_4 = arith.constant 0 : index
    %3 = vector.load %arg3[%c0_3, %c0_4] : memref<1x96xf32, #tpu.memory_space<vmem>>, vector<1x96xf32>
    %4 = vector.broadcast %3 : vector<1x96xf32> to vector<16x96xf32>
    %5 = arith.addf %2, %4 : vector<16x96xf32>
    %c0_5 = arith.constant 0 : index
    %c0_6 = arith.constant 0 : index
    %6 = vector.load %arg4[%c0_5, %c0_6] : memref<16x96xf32, #tpu.memory_space<vmem>>, vector<16x96xf32>
    tpu.vector_store %arg4[%c0_5, %c0_6], %5 {strides = array<i32>} : memref<16x96xf32, #tpu.memory_space<vmem>>, vector<16x96xf32>,
    return
  }
  func.func @transform_0(%arg0: i32) -> (i32, i32) {
    %c0_i32 = arith.constant 0 : i32
    %c0_i32_0 = arith.constant 0 : i32
    return %arg0, %c0_i32 : i32, i32
  }
  func.func @transform_1(%arg0: i32) -> (i32, i32) {
    %c0_i32 = arith.constant 0 : i32
    %c0_i32_0 = arith.constant 0 : i32
    %c0_i32_1 = arith.constant 0 : i32
    return %c0_i32, %c0_i32_0 : i32, i32
  }
  func.func @transform_2(%arg0: i32) -> (i32, i32) {
    %c0_i32 = arith.constant 0 : i32
    %c0_i32_0 = arith.constant 0 : i32
    %c0_i32_1 = arith.constant 0 : i32
    return %c0_i32, %c0_i32_0 : i32, i32
  }
  func.func @transform_3(%arg0: i32) -> (i32, i32) {
    %c0_i32 = arith.constant 0 : i32
    %c0_i32_0 = arith.constant 0 : i32
    return %arg0, %c0_i32 : i32, i32
  }
}

module attributes {stable_mosaic.version = 11 : i64} {
  func.func @_post_kernel(%arg0: i32, %arg1: memref<16x32xf32, #tpu.memory_space<vmem>>, %arg2: memref<16x32xf32, #tpu.memory_space<vmem>>, %arg3: memref<32x32xf32, #tpu.memory_space<vmem>>, %arg4: memref<1x32xf32, #tpu.memory_space<vmem>>, %arg5: memref<1x32xf32, #tpu.memory_space<vmem>>, %arg6: memref<1x32xf32, #tpu.memory_space<vmem>>, %arg7: memref<32x64xf32, #tpu.memory_space<vmem>>, %arg8: memref<1x64xf32, #tpu.memory_space<vmem>>, %arg9: memref<64x32xf32, #tpu.memory_space<vmem>>, %arg10: memref<1x32xf32, #tpu.memory_space<vmem>>, %arg11: memref<1x32xf32, #tpu.memory_space<vmem>>, %arg12: memref<1x32xf32, #tpu.memory_space<vmem>>, %arg13: memref<16x32xf32, #tpu.memory_space<vmem>>) attributes {dimension_semantics = [#tpu.dimension_semantics<parallel>], iteration_bounds = array<i64: 1>, scalar_prefetch = 0 : i64, scratch_operands = 0 : i64, tpu.core_type = #tpu.core_type<tc>, window_params = [{transform_indices = @transform_0, window_bounds = array<i64: 16, 32>}, {transform_indices = @transform_1, window_bounds = array<i64: 16, 32>}, {pipeline_mode = #tpu.pipeline_mode<synchronous>, transform_indices = @transform_2, window_bounds = array<i64: 32, 32>}, {pipeline_mode = #tpu.pipeline_mode<synchronous>, transform_indices = @transform_3, window_bounds = array<i64: 1, 32>}, {pipeline_mode = #tpu.pipeline_mode<synchronous>, transform_indices = @transform_4, window_bounds = array<i64: 1, 32>}, {pipeline_mode = #tpu.pipeline_mode<synchronous>, transform_indices = @transform_5, window_bounds = array<i64: 1, 32>}, {pipeline_mode = #tpu.pipeline_mode<synchronous>, transform_indices = @transform_6, window_bounds = array<i64: 32, 64>}, {pipeline_mode = #tpu.pipeline_mode<synchronous>, transform_indices = @transform_7, window_bounds = array<i64: 1, 64>}, {pipeline_mode = #tpu.pipeline_mode<synchronous>, transform_indices = @transform_8, window_bounds = array<i64: 64, 32>}, {pipeline_mode = #tpu.pipeline_mode<synchronous>, transform_indices = @transform_9, window_bounds = array<i64: 1, 32>}, {pipeline_mode = #tpu.pipeline_mode<synchronous>, transform_indices = @transform_10, window_bounds = array<i64: 1, 32>}, {pipeline_mode = #tpu.pipeline_mode<synchronous>, transform_indices = @transform_11, window_bounds = array<i64: 1, 32>}, {transform_indices = @transform_12, window_bounds = array<i64: 16, 32>}]} {
    %c0 = arith.constant 0 : index
    %c0_0 = arith.constant 0 : index
    %0 = vector.load %arg1[%c0, %c0_0] : memref<16x32xf32, #tpu.memory_space<vmem>>, vector<16x32xf32>
    %c0_1 = arith.constant 0 : index
    %c0_2 = arith.constant 0 : index
    %1 = vector.load %arg2[%c0_1, %c0_2] : memref<16x32xf32, #tpu.memory_space<vmem>>, vector<16x32xf32>
    %c0_3 = arith.constant 0 : index
    %c0_4 = arith.constant 0 : index
    %2 = vector.load %arg3[%c0_3, %c0_4] : memref<32x32xf32, #tpu.memory_space<vmem>>, vector<32x32xf32>
    %cst = arith.constant dense<0.000000e+00> : vector<16x32xf32>
    %3 = tpu.matmul %1, %2, %cst {dimension_numbers = #tpu.dot_dimension_numbers<[1], [0], [0], [1], [0, 0, 1, 1], [], []>} : vector<16x32xf32>, vector<32x32xf32>, vector<16x32xf32> -> vector<16x32xf32>
    %c0_5 = arith.constant 0 : index
    %c0_6 = arith.constant 0 : index
    %4 = vector.load %arg4[%c0_5, %c0_6] : memref<1x32xf32, #tpu.memory_space<vmem>>, vector<1x32xf32>
    %5 = vector.broadcast %4 : vector<1x32xf32> to vector<16x32xf32>
    %6 = arith.addf %3, %5 : vector<16x32xf32>
    %7 = arith.addf %0, %6 : vector<16x32xf32>
    %cst_7 = arith.constant dense<0.000000e+00> : vector<16xf32>
    %8 = vector.multi_reduction <add>, %7, %cst_7 [1] : vector<16x32xf32> to vector<16xf32>
    %9 = vector.shape_cast %8 : vector<16xf32> to vector<16x1xf32>
    %cst_8 = arith.constant 3.200000e+01 : f32
    %10 = vector.broadcast %cst_8 : f32 to vector<16x1xf32>
    %11 = arith.divf %9, %10 : vector<16x1xf32>
    %12 = vector.broadcast %11 : vector<16x1xf32> to vector<16x32xf32>
    %13 = arith.subf %7, %12 : vector<16x32xf32>
    %14 = arith.mulf %13, %13 : vector<16x32xf32>
    %cst_9 = arith.constant dense<0.000000e+00> : vector<16xf32>
    %15 = vector.multi_reduction <add>, %14, %cst_9 [1] : vector<16x32xf32> to vector<16xf32>
    %16 = vector.shape_cast %15 : vector<16xf32> to vector<16x1xf32>
    %cst_10 = arith.constant 3.200000e+01 : f32
    %17 = vector.broadcast %cst_10 : f32 to vector<16x1xf32>
    %18 = arith.divf %16, %17 : vector<16x1xf32>
    %19 = vector.broadcast %11 : vector<16x1xf32> to vector<16x32xf32>
    %20 = arith.subf %7, %19 : vector<16x32xf32>
    %cst_11 = arith.constant 9.99999974E-6 : f32
    %21 = vector.broadcast %cst_11 : f32 to vector<16x1xf32>
    %22 = arith.addf %18, %21 : vector<16x1xf32>
    %23 = math.rsqrt %22 : vector<16x1xf32>
    %24 = vector.broadcast %23 : vector<16x1xf32> to vector<16x32xf32>
    %25 = arith.mulf %20, %24 : vector<16x32xf32>
    %c0_12 = arith.constant 0 : index
    %c0_13 = arith.constant 0 : index
    %26 = vector.load %arg5[%c0_12, %c0_13] : memref<1x32xf32, #tpu.memory_space<vmem>>, vector<1x32xf32>
    %27 = vector.broadcast %26 : vector<1x32xf32> to vector<16x32xf32>
    %28 = arith.mulf %25, %27 : vector<16x32xf32>
    %c0_14 = arith.constant 0 : index
    %c0_15 = arith.constant 0 : index
    %29 = vector.load %arg6[%c0_14, %c0_15] : memref<1x32xf32, #tpu.memory_space<vmem>>, vector<1x32xf32>
    %30 = vector.broadcast %29 : vector<1x32xf32> to vector<16x32xf32>
    %31 = arith.addf %28, %30 : vector<16x32xf32>
    %c0_16 = arith.constant 0 : index
    %c0_17 = arith.constant 0 : index
    %32 = vector.load %arg7[%c0_16, %c0_17] : memref<32x64xf32, #tpu.memory_space<vmem>>, vector<32x64xf32>
    %cst_18 = arith.constant dense<0.000000e+00> : vector<16x64xf32>
    %33 = tpu.matmul %31, %32, %cst_18 {dimension_numbers = #tpu.dot_dimension_numbers<[1], [0], [0], [1], [0, 0, 1, 1], [], []>} : vector<16x32xf32>, vector<32x64xf32>, vector<16x64xf32> -> vector<16x64xf32>
    %c0_19 = arith.constant 0 : index
    %c0_20 = arith.constant 0 : index
    %34 = vector.load %arg8[%c0_19, %c0_20] : memref<1x64xf32, #tpu.memory_space<vmem>>, vector<1x64xf32>
    %35 = vector.broadcast %34 : vector<1x64xf32> to vector<16x64xf32>
    %36 = arith.addf %33, %35 : vector<16x64xf32>
    %cst_21 = arith.constant 0.000000e+00 : f32
    %37 = vector.broadcast %cst_21 : f32 to vector<16x64xf32>
    %38 = arith.maximumf %36, %37 : vector<16x64xf32>
    %c0_22 = arith.constant 0 : index
    %c0_23 = arith.constant 0 : index
    %39 = vector.load %arg9[%c0_22, %c0_23] : memref<64x32xf32, #tpu.memory_space<vmem>>, vector<64x32xf32>
    %cst_24 = arith.constant dense<0.000000e+00> : vector<16x32xf32>
    %40 = tpu.matmul %38, %39, %cst_24 {dimension_numbers = #tpu.dot_dimension_numbers<[1], [0], [0], [1], [0, 0, 1, 1], [], []>} : vector<16x64xf32>, vector<64x32xf32>, vector<16x32xf32> -> vector<16x32xf32>
    %c0_25 = arith.constant 0 : index
    %c0_26 = arith.constant 0 : index
    %41 = vector.load %arg10[%c0_25, %c0_26] : memref<1x32xf32, #tpu.memory_space<vmem>>, vector<1x32xf32>
    %42 = vector.broadcast %41 : vector<1x32xf32> to vector<16x32xf32>
    %43 = arith.addf %40, %42 : vector<16x32xf32>
    %44 = arith.addf %31, %43 : vector<16x32xf32>
    %cst_27 = arith.constant dense<0.000000e+00> : vector<16xf32>
    %45 = vector.multi_reduction <add>, %44, %cst_27 [1] : vector<16x32xf32> to vector<16xf32>
    %46 = vector.shape_cast %45 : vector<16xf32> to vector<16x1xf32>
    %cst_28 = arith.constant 3.200000e+01 : f32
    %47 = vector.broadcast %cst_28 : f32 to vector<16x1xf32>
    %48 = arith.divf %46, %47 : vector<16x1xf32>
    %49 = vector.broadcast %48 : vector<16x1xf32> to vector<16x32xf32>
    %50 = arith.subf %44, %49 : vector<16x32xf32>
    %51 = arith.mulf %50, %50 : vector<16x32xf32>
    %cst_29 = arith.constant dense<0.000000e+00> : vector<16xf32>
    %52 = vector.multi_reduction <add>, %51, %cst_29 [1] : vector<16x32xf32> to vector<16xf32>
    %53 = vector.shape_cast %52 : vector<16xf32> to vector<16x1xf32>
    %cst_30 = arith.constant 3.200000e+01 : f32
    %54 = vector.broadcast %cst_30 : f32 to vector<16x1xf32>
    %55 = arith.divf %53, %54 : vector<16x1xf32>
    %56 = vector.broadcast %48 : vector<16x1xf32> to vector<16x32xf32>
    %57 = arith.subf %44, %56 : vector<16x32xf32>
    %cst_31 = arith.constant 9.99999974E-6 : f32
    %58 = vector.broadcast %cst_31 : f32 to vector<16x1xf32>
    %59 = arith.addf %55, %58 : vector<16x1xf32>
    %60 = math.rsqrt %59 : vector<16x1xf32>
    %61 = vector.broadcast %60 : vector<16x1xf32> to vector<16x32xf32>
    %62 = arith.mulf %57, %61 : vector<16x32xf32>
    %c0_32 = arith.constant 0 : index
    %c0_33 = arith.constant 0 : index
    %63 = vector.load %arg11[%c0_32, %c0_33] : memref<1x32xf32, #tpu.memory_space<vmem>>, vector<1x32xf32>
    %64 = vector.broadcast %63 : vector<1x32xf32> to vector<16x32xf32>
    %65 = arith.mulf %62, %64 : vector<16x32xf32>
    %c0_34 = arith.constant 0 : index
    %c0_35 = arith.constant 0 : index
    %66 = vector.load %arg12[%c0_34, %c0_35] : memref<1x32xf32, #tpu.memory_space<vmem>>, vector<1x32xf32>
    %67 = vector.broadcast %66 : vector<1x32xf32> to vector<16x32xf32>
    %68 = arith.addf %65, %67 : vector<16x32xf32>
    %c0_36 = arith.constant 0 : index
    %c0_37 = arith.constant 0 : index
    %69 = vector.load %arg13[%c0_36, %c0_37] : memref<16x32xf32, #tpu.memory_space<vmem>>, vector<16x32xf32>
    tpu.vector_store %arg13[%c0_36, %c0_37], %68 {strides = array<i32>} : memref<16x32xf32, #tpu.memory_space<vmem>>, vector<16x32xf32>,
    return
  }
  func.func @transform_0(%arg0: i32) -> (i32, i32) {
    %c0_i32 = arith.constant 0 : i32
    %c0_i32_0 = arith.constant 0 : i32
    return %arg0, %c0_i32 : i32, i32
  }
  func.func @transform_1(%arg0: i32) -> (i32, i32) {
    %c0_i32 = arith.constant 0 : i32
    %c0_i32_0 = arith.constant 0 : i32
    return %arg0, %c0_i32 : i32, i32
  }
  func.func @transform_2(%arg0: i32) -> (i32, i32) {
    %c0_i32 = arith.constant 0 : i32
    %c0_i32_0 = arith.constant 0 : i32
    %c0_i32_1 = arith.constant 0 : i32
    return %c0_i32, %c0_i32_0 : i32, i32
  }
  func.func @transform_3(%arg0: i32) -> (i32, i32) {
    %c0_i32 = arith.constant 0 : i32
    %c0_i32_0 = arith.constant 0 : i32
    %c0_i32_1 = arith.constant 0 : i32
    return %c0_i32, %c0_i32_0 : i32, i32
  }
  func.func @transform_4(%arg0: i32) -> (i32, i32) {
    %c0_i32 = arith.constant 0 : i32
    %c0_i32_0 = arith.constant 0 : i32
    %c0_i32_1 = arith.constant 0 : i32
    return %c0_i32, %c0_i32_0 : i32, i32
  }
  func.func @transform_5(%arg0: i32) -> (i32, i32) {
    %c0_i32 = arith.constant 0 : i32
    %c0_i32_0 = arith.constant 0 : i32
    %c0_i32_1 = arith.constant 0 : i32
    return %c0_i32, %c0_i32_0 : i32, i32
  }
  func.func @transform_6(%arg0: i32) -> (i32, i32) {
    %c0_i32 = arith.constant 0 : i32
    %c0_i32_0 = arith.constant 0 : i32
    %c0_i32_1 = arith.constant 0 : i32
    return %c0_i32, %c0_i32_0 : i32, i32
  }
  func.func @transform_7(%arg0: i32) -> (i32, i32) {
    %c0_i32 = arith.constant 0 : i32
    %c0_i32_0 = arith.constant 0 : i32
    %c0_i32_1 = arith.constant 0 : i32
    return %c0_i32, %c0_i32_0 : i32, i32
  }
  func.func @transform_8(%arg0: i32) -> (i32, i32) {
    %c0_i32 = arith.constant 0 : i32
    %c0_i32_0 = arith.constant 0 : i32
    %c0_i32_1 = arith.constant 0 : i32
    return %c0_i32, %c0_i32_0 : i32, i32
  }
  func.func @transform_9(%arg0: i32) -> (i32, i32) {
    %c0_i32 = arith.constant 0 : i32
    %c0_i32_0 = arith.constant 0 : i32
    %c0_i32_1 = arith.constant 0 : i32
    return %c0_i32, %c0_i32_0 : i32, i32
  }
  func.func @transform_10(%arg0: i32) -> (i32, i32) {
    %c0_i32 = arith.constant 0 : i32
    %c0_i32_0 = arith.constant 0 : i32
    %c0_i32_1 = arith.constant 0 : i32
    return %c0_i32, %c0_i32_0 : i32, i32
  }
  func.func @transform_11(%arg0: i32) -> (i32, i32) {
    %c0_i32 = arith.constant 0 : i32
    %c0_i32_0 = arith.constant 0 : i32
    %c0_i32_1 = arith.constant 0 : i32
    return %c0_i32, %c0_i32_0 : i32, i32
  }
  func.func @transform_12(%arg0: i32) -> (i32, i32) {
    %c0_i32 = arith.constant 0 : i32
    %c0_i32_0 = arith.constant 0 : i32
    return %arg0, %c0_i32 : i32, i32
  }
}

</mosaic_0001>

<llo_original>
// kernel: encoder_layer.3
$region0: #{encoder_layer.3}
  #allocation0 [shape = 'u32[]', space=smem, size = 0x4, offset = 0x4, fixed_abs, tag = 'smem constant byte address 0x4 - core index']
  #allocation1 [shape = 'u32[144,128]{1,0:T(1,128)}', space=vmem, size = 0x12000, scoped, tag = 'internal scratch']
  %s0 = inlined_call_operand.hbm [shape: f32[16,32], index: 0, kind: input, shape index: {}]
  %s1 = inlined_call_operand.vmem [shape: f32[32,96], index: 1, kind: input, shape index: {}]
  %s2 = inlined_call_operand.vmem [shape: f32[1,96], index: 2, kind: input, shape index: {}]
  %s3 = inlined_call_operand.vmem [shape: f32[16,96], index: 3, kind: output, shape index: {}]
  %s4 = sld [smem:[#allocation0]]
  $region26: #{encoder_layer.3} parent=0
    _
  %s6 = ssub.s32 1, %s4
  %s7 = scalar_select 0, %s6, %s4
  $region1: #{encoder_layer.3} parent=0
    #allocation2 [shape = 'u8[8192]{0}', space=vmem, size = 0x2000, scoped, tag = 'input window, operand 0, single buffered']
    #allocation3 [shape = 's32[1]{0}', space=sflag, size = 0x4, scoped, tag = 'scoped memory for encoder_layer.3']
    %8 = vsyncpa [#allocation3], 0
    // Predicated region
    $region2: #{encoder_layer.3} parent=1 // pred_check
      _
    $region3: #{encoder_layer.3} parent=1 // pred_check_branch
      %10 = sbr.rel (0) target = $region5
    $region4: #{encoder_layer.3} parent=1 // pred_region
      %s12 = ssub.s32 256, 256
      %13 = vsyncadd [#allocation3], %s12
      %s14 = sshll.u32 [#allocation2], 4
      %s15 = int_to_ptr.vmem [resolvable:$true] %s14
      %20 = dma.hbm_to_vmem [thread:$0]  %s0, 256, %s15, [#allocation3], 128, 128, 8
    $region5: #{encoder_layer.3} parent=1 // pred_fallthru
      _
    // Predicated region
    $region6: #{encoder_layer.3} parent=1 // pred_check
      _
    $region7: #{encoder_layer.3} parent=1 // pred_check_branch
      %22 = sbr.rel (0) target = $region9
    $region8: #{encoder_layer.3} parent=1 // pred_region
      _
    $region9: #{encoder_layer.3} parent=1 // pred_fallthru
      _
    // Predicated region
    $region10: #{encoder_layer.3} parent=1 // pred_check
      _
    $region11: #{encoder_layer.3} parent=1 // pred_check_branch
      %24 = sbr.rel (0) target = $region13
    $region12: #{encoder_layer.3} parent=1 // pred_region
      _
    $region13: #{encoder_layer.3} parent=1 // pred_fallthru
      _
    // Predicated region
    $region14: #{encoder_layer.3} parent=1 // pred_check
      _
    $region15: #{encoder_layer.3} parent=1 // pred_check_branch
      %26 = sbr.rel (0) target = $region17
    $region16: #{encoder_layer.3} parent=1 // pred_region
      %27 = dma.done [#allocation3], 256
    $region17: #{encoder_layer.3} parent=1 // pred_fallthru
      _
    %v28 = vld [vmem:[#allocation2] sm:$0xff]
    %v29 = vld [vmem:[#allocation2 + $0x8] sm:$0xff]
    %v30 = vld [vmem:[%s1] sm:$0xff]
    %v31 = vld [vmem:[%s1 + $0x8] sm:$0xff]
    %v32 = vld [vmem:[%s1 + $0x10] sm:$0xff]
    %v33 = vld [vmem:[%s1 + $0x18] sm:$0xff]
    %v34 = vld [vmem:[%s2] sm:$0x1]
    %v36 = vlaneseq
    %v37 = vshrl.u32 %v36, 7
    %v38 = vsub.s32 0, %v37
    %v39 = vrot.slane %v34, %v38
    %vm41 = vcmask 261120
    %v43 = vsel %vm41, %v28, 0
    %v46 = vsel %vm41, %v29, 0
    %48 = vmatprep.subr.mxu0 0.0
    %49 = vmatpush1.msra.mxu0 %v30
    %50 = vmatprep.subr.mxu0 0.0
    %51 = vmatpush1.msra.mxu0 %v31
    %52 = vmatprep.subr.mxu0 0.0
    %53 = vmatpush1.msra.mxu0 %v32
    %54 = vmatprep.subr.mxu0 0.0
    %55 = vmatpush1.msra.mxu0 %v33
    %56 = vmatprep.subr.mxu0 0.0
    %57 = vmatpush1.msra.mxu0 0.0
    %58 = vmatprep.subr.mxu0 0.0
    %59 = vmatpush1.msra.mxu0 0.0
    %60 = vmatprep.subr.mxu0 0.0
    %61 = vmatpush1.msra.mxu0 0.0
    %62 = vmatprep.subr.mxu0 0.0
    %63 = vmatpush1.msra.mxu0 0.0
    %64 = vmatprep.subr.mxu0 0.0
    %65 = vmatpush1.msra.mxu0 0.0
    %66 = vmatprep.subr.mxu0 0.0
    %67 = vmatpush1.msra.mxu0 0.0
    %68 = vmatprep.subr.mxu0 0.0
    %69 = vmatpush1.msra.mxu0 0.0
    %70 = vmatprep.subr.mxu0 0.0
    %71 = vmatpush1.msra.mxu0 0.0
    %72 = vmatprep.subr.mxu0 0.0
    %73 = vmatpush1.msra.mxu0 0.0
    %74 = vmatprep.subr.mxu0 0.0
    %75 = vmatpush1.msra.mxu0 0.0
    %76 = vmatprep.subr.mxu0 0.0
    %77 = vmatpush1.msra.mxu0 0.0
    %78 = vmatprep.subr.mxu0 0.0
    %79 = vmatpush1.msra.mxu0 0.0
    %80 = vmatprep.subr.mxu0 0.0
    %81 = vmatpush1.msra.mxu0 0.0
    %82 = vmatprep.subr.mxu0 0.0
    %83 = vmatpush1.msra.mxu0 0.0
    %84 = vmatprep.subr.mxu0 0.0
    %85 = vmatpush1.msra.mxu0 0.0
    %86 = vmatprep.subr.mxu0 0.0
    %87 = vmatpush1.msra.mxu0 0.0
    %88 = vmatprep.subr.mxu0 0.0
    %89 = vmatpush1.msra.mxu0 0.0
    %90 = vmatprep.subr.mxu0 0.0
    %91 = vmatpush1.msra.mxu0 0.0
    %92 = vmatprep.subr.mxu0 0.0
    %93 = vmatpush1.msra.mxu0 0.0
    %94 = vmatprep.subr.mxu0 0.0
    %95 = vmatpush1.msra.mxu0 0.0
    %96 = vmatprep.subr.mxu0 0.0
    %97 = vmatpush1.msra.mxu0 0.0
    %98 = vmatprep.subr.mxu0 0.0
    %99 = vmatpush1.msra.mxu0 0.0
    %100 = vmatprep.subr.mxu0 0.0
    %101 = vmatpush1.msra.mxu0 0.0
    %102 = vmatprep.subr.mxu0 0.0
    %103 = vmatpush1.msra.mxu0 0.0
    %104 = vmatprep.subr.mxu0 0.0
    %105 = vmatpush1.msra.mxu0 0.0
    %106 = vmatprep.subr.mxu0 0.0
    %107 = vmatpush1.msra.mxu0 0.0
    %108 = vmatprep.subr.mxu0 0.0
    %109 = vmatpush1.msra.mxu0 0.0
    %110 = vmatprep.subr.mxu0 0.0
    %111 = vmatpush1.msra.mxu0 0.0
    %112 = vmatprep.mubr.f32.mxu0 0.0
    %113 = vmatmul.mubr.f32.gmra.mrb[0].mxu0 %v43
    %v114 = vpop.f32.mrb[0].mxu0
    %v115 = vadd.f32 %v39, %v114
    %v116 = vpop.f32.mrb[0].mxu0
    %117 = vmatprep.mubr.f32.mxu0 0.0
    %118 = vmatmul.mubr.f32.gmra.mrb[0].mxu0 %v46
    %v119 = vpop.f32.mrb[0].mxu0
    %v120 = vadd.f32 %v39, %v119
    %v121 = vpop.f32.mrb[0].mxu0
    %122 = vdwg.mxu0
    %vm123 = vcmask 785408
    %124 = vst.msk [vmem:[%s3] sm:$0xff] %vm123, %v115
    %125 = vst.msk [vmem:[%s3 + $0x8] sm:$0xff] %vm123, %v120
    // Predicated region
    $region18: #{encoder_layer.3} parent=1 // pred_check
      _
    $region19: #{encoder_layer.3} parent=1 // pred_check_branch
      %127 = sbr.rel (0) target = $region21
    $region20: #{encoder_layer.3} parent=1 // pred_region
      _
    $region21: #{encoder_layer.3} parent=1 // pred_fallthru
      _
    // Predicated region
    $region22: #{encoder_layer.3} parent=1 // pred_check
      _
    $region23: #{encoder_layer.3} parent=1 // pred_check_branch
      %129 = sbr.rel (0) target = $region25
    $region24: #{encoder_layer.3} parent=1 // pred_region
      _
    $region25: #{encoder_layer.3} parent=1 // pred_fallthru
      _
    %130 = vsyncpa [#allocation3], 1

// kernel: encoder_layer.4
$region0: #{encoder_layer.4}
  #allocation0 [shape = 'u32[]', space=smem, size = 0x4, offset = 0x4, fixed_abs, tag = 'smem constant byte address 0x4 - core index']
  #allocation1 [shape = 'u32[144,128]{1,0:T(1,128)}', space=vmem, size = 0x12000, scoped, tag = 'internal scratch']
  %s0 = inlined_call_operand.vmem [shape: f32[2,4,8,8], index: 0, kind: input, shape index: {}]
  %s1 = inlined_call_operand.vmem [shape: f32[2,4,8,8], index: 1, kind: input, shape index: {}]
  %s2 = inlined_call_operand.vmem [shape: f32[2,4,8,8], index: 2, kind: input, shape index: {}]
  %s3 = inlined_call_operand.vmem [shape: f32[2,4,8,8], index: 3, kind: output, shape index: {}]
  %s4 = sld [smem:[#allocation0]]
  $region45: #{encoder_layer.4} parent=0
    _
  %s6 = ssub.s32 1, %s4
  %s7 = scalar_select 0, %s6, %s4
  loop: start=0, step=1, limit=4
  $region2: #{encoder_layer.4} parent=0 // loop_pre_header
    _
  $region3: #{encoder_layer.4} parent=0 // loop_header
    %s9 = sphi 0, %s13
    %p10 = scmp.ge.s32.totalorder %s9, 4
    %s19 = sphi 0, %s21
    %s22 = sphi 0, %s19
    %s23 = sphi 0, %s22
    %s39 = sphi 0, %s23
    %s45 = sphi 0, %s47
    %s48 = sphi 0, %s45
    %s49 = sphi 0, %s48
    %s65 = sphi 0, %s49
    %s71 = sphi 0, %s73
    %s74 = sphi 0, %s71
    %s75 = sphi 0, %s74
    %s91 = sphi 0, %s75
    %s97 = sphi 0, %s99
    %s100 = sphi 0, %s97
    %s101 = sphi 0, %s100
    %s117 = sphi 0, %s101
  $region4: #{encoder_layer.4} parent=0 // loop_header_branch
    %12 = sbr.rel (%p10) target = $region8
  $region5: #{encoder_layer.4} parent=0 // loop_body
    %s14 = ssub.s32 %s9, 1
    %s15 = ssub.s32 %s9, 2
    %s16 = sadd.s32 %s9, 1
    %s17 = ssub.s32 %s9, %s16
    %p18 = scmp.eq.s32.totalorder %s17, 0
    %s20 = sadd.s32 %s19, 1
    %s21 = scalar_select %p18, %s19, %s20
    %p24 = pneg %p18
    %p25 = scmp.eq.s32.totalorder %s9, 1
    %p26 = por %p24, %p25
    %p27 = scmp.ne.s32.totalorder %s19, %s22
    %p28 = scmp.eq.s32.totalorder %s9, 0
    %p29 = por %p27, %p28
    %p30 = scmp.ne.s32.totalorder %s19, %s22
    %p31 = scmp.eq.s32.totalorder %s14, 1
    %p32 = por %p30, %p31
    %p33 = scmp.ne.s32.totalorder %s22, %s23
    %p34 = scmp.eq.s32.totalorder %s14, 0
    %p35 = por %p33, %p34
    %p36 = scmp.ne.s32.totalorder %s22, %s23
    %p37 = scmp.eq.s32.totalorder %s15, 1
    %p38 = por %p36, %p37
    %p40 = scmp.ne.s32.totalorder %s23, %s39
    %p41 = scmp.eq.s32.totalorder %s15, 0
    %p42 = por %p40, %p41
    %s43 = ssub.s32 %s9, %s16
    %p44 = scmp.eq.s32.totalorder %s43, 0
    %s46 = sadd.s32 %s45, 1
    %s47 = scalar_select %p44, %s45, %s46
    %p50 = pneg %p44
    %p51 = scmp.eq.s32.totalorder %s9, 1
    %p52 = por %p50, %p51
    %p53 = scmp.ne.s32.totalorder %s45, %s48
    %p54 = scmp.eq.s32.totalorder %s9, 0
    %p55 = por %p53, %p54
    %p56 = scmp.ne.s32.totalorder %s45, %s48
    %p57 = scmp.eq.s32.totalorder %s14, 1
    %p58 = por %p56, %p57
    %p59 = scmp.ne.s32.totalorder %s48, %s49
    %p60 = scmp.eq.s32.totalorder %s14, 0
    %p61 = por %p59, %p60
    %p62 = scmp.ne.s32.totalorder %s48, %s49
    %p63 = scmp.eq.s32.totalorder %s15, 1
    %p64 = por %p62, %p63
    %p66 = scmp.ne.s32.totalorder %s49, %s65
    %p67 = scmp.eq.s32.totalorder %s15, 0
    %p68 = por %p66, %p67
    %s69 = ssub.s32 %s9, %s16
    %p70 = scmp.eq.s32.totalorder %s69, 0
    %s72 = sadd.s32 %s71, 1
    %s73 = scalar_select %p70, %s71, %s72
    %p76 = pneg %p70
    %p77 = scmp.eq.s32.totalorder %s9, 1
    %p78 = por %p76, %p77
    %p79 = scmp.ne.s32.totalorder %s71, %s74
    %p80 = scmp.eq.s32.totalorder %s9, 0
    %p81 = por %p79, %p80
    %p82 = scmp.ne.s32.totalorder %s71, %s74
    %p83 = scmp.eq.s32.totalorder %s14, 1
    %p84 = por %p82, %p83
    %p85 = scmp.ne.s32.totalorder %s74, %s75
    %p86 = scmp.eq.s32.totalorder %s14, 0
    %p87 = por %p85, %p86
    %p88 = scmp.ne.s32.totalorder %s74, %s75
    %p89 = scmp.eq.s32.totalorder %s15, 1
    %p90 = por %p88, %p89
    %p92 = scmp.ne.s32.totalorder %s75, %s91
    %p93 = scmp.eq.s32.totalorder %s15, 0
    %p94 = por %p92, %p93
    %s95 = ssub.s32 %s9, %s16
    %p96 = scmp.eq.s32.totalorder %s95, 0
    %s98 = sadd.s32 %s97, 1
    %s99 = scalar_select %p96, %s97, %s98
    %p102 = pneg %p96
    %p103 = scmp.eq.s32.totalorder %s9, 1
    %p104 = por %p102, %p103
    %p105 = scmp.ne.s32.totalorder %s97, %s100
    %p106 = scmp.eq.s32.totalorder %s9, 0
    %p107 = por %p105, %p106
    %p108 = scmp.ne.s32.totalorder %s97, %s100
    %p109 = scmp.eq.s32.totalorder %s14, 1
    %p110 = por %p108, %p109
    %p111 = scmp.ne.s32.totalorder %s100, %s101
    %p112 = scmp.eq.s32.totalorder %s14, 0
    %p113 = por %p111, %p112
    %p114 = scmp.ne.s32.totalorder %s100, %s101
    %p115 = scmp.eq.s32.totalorder %s15, 1
    %p116 = por %p114, %p115
    %p118 = scmp.ne.s32.totalorder %s101, %s117
    %p119 = scmp.eq.s32.totalorder %s15, 0
    %p120 = por %p118, %p119
    %p121 = scmp.le.s32.totalorder 1, %s9
    %p122 = scmp.lt.s32.totalorder %s9, 3
    %p123 = pnand %p121, %p122
    %p124 = pneg %p123
    // Predicated region
    $region9: #{encoder_layer.4} parent=5 // pred_check
      _
    $region10: #{encoder_layer.4} parent=5 // pred_check_branch
      %126 = sbr.rel (%p123) target = $region12
    $region11: #{encoder_layer.4} parent=5 // pred_region
      %s127 = ssub.s32 %s9, 1
    $region12: #{encoder_layer.4} parent=5 // pred_fallthru
      _
    %p128 = scmp.lt.s32.totalorder %s9, 2
    // Predicated region
    $region13: #{encoder_layer.4} parent=5 // pred_check
      %p129 = pneg %p128
    $region14: #{encoder_layer.4} parent=5 // pred_check_branch
      %131 = sbr.rel (%p129) target = $region16
    $region15: #{encoder_layer.4} parent=5 // pred_region
      // Predicated region
      $region17: #{encoder_layer.4} parent=15 // pred_check
        %p132 = pneg %p29
      $region18: #{encoder_layer.4} parent=15 // pred_check_branch
        %134 = sbr.rel (%p132) target = $region20
      $region19: #{encoder_layer.4} parent=15 // pred_region
        %p135 = scmp.lt.s32.totalorder %s9, 1
        %s136 = scalar_select %p135, %s9, 1
        %s137 = smul.addr %s136, 4
        %s138 = smul.addr %s137, 8
        %s139 = scalar_lea.vmem %s0, %s138
      $region20: #{encoder_layer.4} parent=15 // pred_fallthru
        _
      // Predicated region
      $region21: #{encoder_layer.4} parent=15 // pred_check
        %p140 = pneg %p55
      $region22: #{encoder_layer.4} parent=15 // pred_check_branch
        %142 = sbr.rel (%p140) target = $region24
      $region23: #{encoder_layer.4} parent=15 // pred_region
        %p143 = scmp.lt.s32.totalorder %s9, 1
        %s144 = scalar_select %p143, %s9, 1
        %s145 = smul.addr %s144, 4
        %s146 = smul.addr %s145, 8
        %s147 = scalar_lea.vmem %s1, %s146
      $region24: #{encoder_layer.4} parent=15 // pred_fallthru
        _
      // Predicated region
      $region25: #{encoder_layer.4} parent=15 // pred_check
        %p148 = pneg %p81
      $region26: #{encoder_layer.4} parent=15 // pred_check_branch
        %150 = sbr.rel (%p148) target = $region28
      $region27: #{encoder_layer.4} parent=15 // pred_region
        %p151 = scmp.lt.s32.totalorder %s9, 1
        %s152 = scalar_select %p151, %s9, 1
        %s153 = smul.addr %s152, 4
        %s154 = smul.addr %s153, 8
        %s155 = scalar_lea.vmem %s2, %s154
      $region28: #{encoder_layer.4} parent=15 // pred_fallthru
        _
    $region16: #{encoder_layer.4} parent=5 // pred_fallthru
      _
    %p156 = scmp.le.s32.totalorder 1, %s9
    %p157 = scmp.lt.s32.totalorder %s9, 3
    %p158 = pnand %p156, %p157
    %p159 = pneg %p158
    // Predicated region
    $region29: #{encoder_layer.4} parent=5 // pred_check
      _
    $region30: #{encoder_layer.4} parent=5 // pred_check_branch
      %161 = sbr.rel (%p158) target = $region32
    $region31: #{encoder_layer.4} parent=5 // pred_region
      %s162 = ssub.s32 %s9, 1
      %p163 = scmp.lt.s32.totalorder %s14, 1
      %s164 = scalar_select %p163, %s14, 1
      %s165 = smul.addr %s164, 4
      %s166 = smul.addr %s165, 8
      %s167 = scalar_lea.vmem %s0, %s166
      %p168 = pneg %p35
      %p169 = pneg %p32
      %p170 = scmp.lt.s32.totalorder %s14, 1
      %s171 = scalar_select %p170, %s14, 1
      %s172 = smul.addr %s171, 4
      %s173 = smul.addr %s172, 8
      %s174 = scalar_lea.vmem %s1, %s173
      %p175 = pneg %p61
      %p176 = pneg %p58
      %p177 = scmp.lt.s32.totalorder %s14, 1
      %s178 = scalar_select %p177, %s14, 1
      %s179 = smul.addr %s178, 4
      %s180 = smul.addr %s179, 8
      %s181 = scalar_lea.vmem %s2, %s180
      %p182 = pneg %p87
      %p183 = pneg %p84
      %p184 = pneg %p113
      %p185 = pneg %p110
      %p186 = scmp.lt.s32.totalorder %s14, 1
      %s187 = scalar_select %p186, %s14, 1
      %s188 = smul.addr %s187, 4
      %s189 = smul.addr %s188, 8
      %s190 = scalar_lea.vmem %s3, %s189
      %p191 = scmp.lt.s32.totalorder %s14, 1
      %s192 = scalar_select %p191, %s14, 1
      %s193 = smul.addr %s192, 4
      %s194 = smul.addr %s193, 8
      %s195 = scalar_lea.vmem %s0, %s194
      %p196 = scmp.lt.s32.totalorder %s14, 1
      %s197 = scalar_select %p196, %s14, 1
      %s198 = smul.addr %s197, 4
      %s199 = smul.addr %s198, 8
      %s200 = scalar_lea.vmem %s1, %s199
      %p201 = scmp.lt.s32.totalorder %s14, 1
      %s202 = scalar_select %p201, %s14, 1
      %s203 = smul.addr %s202, 4
      %s204 = smul.addr %s203, 8
      %s205 = scalar_lea.vmem %s2, %s204
      %p206 = scmp.lt.s32.totalorder %s14, 1
      %s207 = scalar_select %p206, %s14, 1
      %s208 = smul.addr %s207, 4
      %s209 = smul.addr %s208, 8
      %s210 = scalar_lea.vmem %s3, %s209
      %v211 = vld [vmem:[%s195] sm:$0xff]
      %v212 = vld [vmem:[%s195 + $0x8] sm:$0xff]
      %v213 = vld [vmem:[%s195 + $0x10] sm:$0xff]
      %v214 = vld [vmem:[%s195 + $0x18] sm:$0xff]
      %v215 = vmul.f32 %v211, 0.35355338
      %v216 = vmul.f32 %v212, 0.35355338
      %v217 = vmul.f32 %v213, 0.35355338
      %v218 = vmul.f32 %v214, 0.35355338
      %v219 = vld [vmem:[%s200] sm:$0xff]
      %v220 = vld [vmem:[%s200 + $0x8] sm:$0xff]
      %v221 = vld [vmem:[%s200 + $0x10] sm:$0xff]
      %v222 = vld [vmem:[%s200 + $0x18] sm:$0xff]
      %v223 = vld [vmem:[%s205] sm:$0xff]
      %v224 = vld [vmem:[%s205 + $0x8] sm:$0xff]
      %v225 = vld [vmem:[%s205 + $0x10] sm:$0xff]
      %v226 = vld [vmem:[%s205 + $0x18] sm:$0xff]
      %vm227 = vcmask 64512
      %v229 = vsel %vm227, %v215, 0
      %v232 = vsel %vm227, %v219, 0
      %234 = vmatprep.subr.mxu0 0.0
      %235 = vmatpush1.xpose.msra.mxu0 %v232
      %236 = vmatprep.subr.mxu0 0.0
      %237 = vmatpush1.xpose.msra.mxu0 0.0
      %238 = vmatprep.subr.mxu0 0.0
      %239 = vmatpush1.xpose.msra.mxu0 0.0
      %240 = vmatprep.subr.mxu0 0.0
      %241 = vmatpush1.xpose.msra.mxu0 0.0
      %242 = vmatprep.subr.mxu0 0.0
      %243 = vmatpush1.xpose.msra.mxu0 0.0
      %244 = vmatprep.subr.mxu0 0.0
      %245 = vmatpush1.xpose.msra.mxu0 0.0
      %246 = vmatprep.subr.mxu0 0.0
      %247 = vmatpush1.xpose.msra.mxu0 0.0
      %248 = vmatprep.subr.mxu0 0.0
      %249 = vmatpush1.xpose.msra.mxu0 0.0
      %250 = vmatprep.subr.mxu0 0.0
      %251 = vmatpush1.xpose.msra.mxu0 0.0
      %252 = vmatprep.subr.mxu0 0.0
      %253 = vmatpush1.xpose.msra.mxu0 0.0
      %254 = vmatprep.subr.mxu0 0.0
      %255 = vmatpush1.xpose.msra.mxu0 0.0
      %256 = vmatprep.subr.mxu0 0.0
      %257 = vmatpush1.xpose.msra.mxu0 0.0
      %258 = vmatprep.subr.mxu0 0.0
      %259 = vmatpush1.xpose.msra.mxu0 0.0
      %260 = vmatprep.subr.mxu0 0.0
      %261 = vmatpush1.xpose.msra.mxu0 0.0
      %262 = vmatprep.subr.mxu0 0.0
      %263 = vmatpush1.xpose.msra.mxu0 0.0
      %264 = vmatprep.subr.mxu0 0.0
      %265 = vmatpush1.xpose.msra.mxu0 0.0
      %266 = vmatprep.subr.mxu0 0.0
      %267 = vmatpush1.xpose.msra.mxu0 0.0
      %268 = vmatprep.subr.mxu0 0.0
      %269 = vmatpush1.xpose.msra.mxu0 0.0
      %270 = vmatprep.subr.mxu0 0.0
      %271 = vmatpush1.xpose.msra.mxu0 0.0
      %272 = vmatprep.subr.mxu0 0.0
      %273 = vmatpush1.xpose.msra.mxu0 0.0
      %274 = vmatprep.subr.mxu0 0.0
      %275 = vmatpush1.xpose.msra.mxu0 0.0
      %276 = vmatprep.subr.mxu0 0.0
      %277 = vmatpush1.xpose.msra.mxu0 0.0
      %278 = vmatprep.subr.mxu0 0.0
      %279 = vmatpush1.xpose.msra.mxu0 0.0
      %280 = vmatprep.subr.mxu0 0.0
      %281 = vmatpush1.xpose.msra.mxu0 0.0
      %282 = vmatprep.subr.mxu0 0.0
      %283 = vmatpush1.xpose.msra.mxu0 0.0
      %284 = vmatprep.subr.mxu0 0.0
      %285 = vmatpush1.xpose.msra.mxu0 0.0
      %286 = vmatprep.subr.mxu0 0.0
      %287 = vmatpush1.xpose.msra.mxu0 0.0
      %288 = vmatprep.subr.mxu0 0.0
      %289 = vmatpush1.xpose.msra.mxu0 0.0
      %290 = vmatprep.subr.mxu0 0.0
      %291 = vmatpush1.xpose.msra.mxu0 0.0
      %292 = vmatprep.subr.mxu0 0.0
      %293 = vmatpush1.xpose.msra.mxu0 0.0
      %294 = vmatprep.subr.mxu0 0.0
      %295 = vmatpush1.xpose.msra.mxu0 0.0
      %296 = vmatprep.subr.mxu0 0.0
      %297 = vmatpush1.xpose.msra.mxu0 0.0
      %298 = vmatprep.mubr.f32.mxu0 0.0
      %299 = vmatmul.mubr.f32.gmra.mrb[0].mxu0 %v229
      %v300 = vpop.f32.mrb[0].mxu0
      %v301 = vadd.f32 0.0, %v300
      %v302 = vpop.f32.mrb[0].mxu0
      %303 = vdwg.mxu0
      %v305 = vsel %vm227, %v216, 0
      %v308 = vsel %vm227, %v220, 0
      %310 = vmatprep.subr.mxu0 0.0
      %311 = vmatpush1.xpose.msra.mxu0 %v308
      %312 = vmatprep.subr.mxu0 0.0
      %313 = vmatpush1.xpose.msra.mxu0 0.0
      %314 = vmatprep.subr.mxu0 0.0
      %315 = vmatpush1.xpose.msra.mxu0 0.0
      %316 = vmatprep.subr.mxu0 0.0
      %317 = vmatpush1.xpose.msra.mxu0 0.0
      %318 = vmatprep.subr.mxu0 0.0
      %319 = vmatpush1.xpose.msra.mxu0 0.0
      %320 = vmatprep.subr.mxu0 0.0
      %321 = vmatpush1.xpose.msra.mxu0 0.0
      %322 = vmatprep.subr.mxu0 0.0
      %323 = vmatpush1.xpose.msra.mxu0 0.0
      %324 = vmatprep.subr.mxu0 0.0
      %325 = vmatpush1.xpose.msra.mxu0 0.0
      %326 = vmatprep.subr.mxu0 0.0
      %327 = vmatpush1.xpose.msra.mxu0 0.0
      %328 = vmatprep.subr.mxu0 0.0
      %329 = vmatpush1.xpose.msra.mxu0 0.0
      %330 = vmatprep.subr.mxu0 0.0
      %331 = vmatpush1.xpose.msra.mxu0 0.0
      %332 = vmatprep.subr.mxu0 0.0
      %333 = vmatpush1.xpose.msra.mxu0 0.0
      %334 = vmatprep.subr.mxu0 0.0
      %335 = vmatpush1.xpose.msra.mxu0 0.0
      %336 = vmatprep.subr.mxu0 0.0
      %337 = vmatpush1.xpose.msra.mxu0 0.0
      %338 = vmatprep.subr.mxu0 0.0
      %339 = vmatpush1.xpose.msra.mxu0 0.0
      %340 = vmatprep.subr.mxu0 0.0
      %341 = vmatpush1.xpose.msra.mxu0 0.0
      %342 = vmatprep.subr.mxu0 0.0
      %343 = vmatpush1.xpose.msra.mxu0 0.0
      %344 = vmatprep.subr.mxu0 0.0
      %345 = vmatpush1.xpose.msra.mxu0 0.0
      %346 = vmatprep.subr.mxu0 0.0
      %347 = vmatpush1.xpose.msra.mxu0 0.0
      %348 = vmatprep.subr.mxu0 0.0
      %349 = vmatpush1.xpose.msra.mxu0 0.0
      %350 = vmatprep.subr.mxu0 0.0
      %351 = vmatpush1.xpose.msra.mxu0 0.0
      %352 = vmatprep.subr.mxu0 0.0
      %353 = vmatpush1.xpose.msra.mxu0 0.0
      %354 = vmatprep.subr.mxu0 0.0
      %355 = vmatpush1.xpose.msra.mxu0 0.0
      %356 = vmatprep.subr.mxu0 0.0
      %357 = vmatpush1.xpose.msra.mxu0 0.0
      %358 = vmatprep.subr.mxu0 0.0
      %359 = vmatpush1.xpose.msra.mxu0 0.0
      %360 = vmatprep.subr.mxu0 0.0
      %361 = vmatpush1.xpose.msra.mxu0 0.0
      %362 = vmatprep.subr.mxu0 0.0
      %363 = vmatpush1.xpose.msra.mxu0 0.0
      %364 = vmatprep.subr.mxu0 0.0
      %365 = vmatpush1.xpose.msra.mxu0 0.0
      %366 = vmatprep.subr.mxu0 0.0
      %367 = vmatpush1.xpose.msra.mxu0 0.0
      %368 = vmatprep.subr.mxu0 0.0
      %369 = vmatpush1.xpose.msra.mxu0 0.0
      %370 = vmatprep.subr.mxu0 0.0
      %371 = vmatpush1.xpose.msra.mxu0 0.0
      %372 = vmatprep.subr.mxu0 0.0
      %373 = vmatpush1.xpose.msra.mxu0 0.0
      %374 = vmatprep.mubr.f32.mxu0 0.0
      %375 = vmatmul.mubr.f32.gmra.mrb[0].mxu0 %v305
      %v376 = vpop.f32.mrb[0].mxu0
      %v377 = vadd.f32 0.0, %v376
      %v378 = vpop.f32.mrb[0].mxu0
      %379 = vdwg.mxu0
      %v381 = vsel %vm227, %v217, 0
      %v384 = vsel %vm227, %v221, 0
      %386 = vmatprep.subr.mxu0 0.0
      %387 = vmatpush1.xpose.msra.mxu0 %v384
      %388 = vmatprep.subr.mxu0 0.0
      %389 = vmatpush1.xpose.msra.mxu0 0.0
      %390 = vmatprep.subr.mxu0 0.0
      %391 = vmatpush1.xpose.msra.mxu0 0.0
      %392 = vmatprep.subr.mxu0 0.0
      %393 = vmatpush1.xpose.msra.mxu0 0.0
      %394 = vmatprep.subr.mxu0 0.0
      %395 = vmatpush1.xpose.msra.mxu0 0.0
      %396 = vmatprep.subr.mxu0 0.0
      %397 = vmatpush1.xpose.msra.mxu0 0.0
      %398 = vmatprep.subr.mxu0 0.0
      %399 = vmatpush1.xpose.msra.mxu0 0.0
      %400 = vmatprep.subr.mxu0 0.0
      %401 = vmatpush1.xpose.msra.mxu0 0.0
      %402 = vmatprep.subr.mxu0 0.0
      %403 = vmatpush1.xpose.msra.mxu0 0.0
      %404 = vmatprep.subr.mxu0 0.0
      %405 = vmatpush1.xpose.msra.mxu0 0.0
      %406 = vmatprep.subr.mxu0 0.0
      %407 = vmatpush1.xpose.msra.mxu0 0.0
      %408 = vmatprep.subr.mxu0 0.0
      %409 = vmatpush1.xpose.msra.mxu0 0.0
      %410 = vmatprep.subr.mxu0 0.0
      %411 = vmatpush1.xpose.msra.mxu0 0.0
      %412 = vmatprep.subr.mxu0 0.0
      %413 = vmatpush1.xpose.msra.mxu0 0.0
      %414 = vmatprep.subr.mxu0 0.0
      %415 = vmatpush1.xpose.msra.mxu0 0.0
      %416 = vmatprep.subr.mxu0 0.0
      %417 = vmatpush1.xpose.msra.mxu0 0.0
      %418 = vmatprep.subr.mxu0 0.0
      %419 = vmatpush1.xpose.msra.mxu0 0.0
      %420 = vmatprep.subr.mxu0 0.0
      %421 = vmatpush1.xpose.msra.mxu0 0.0
      %422 = vmatprep.subr.mxu0 0.0
      %423 = vmatpush1.xpose.msra.mxu0 0.0
      %424 = vmatprep.subr.mxu0 0.0
      %425 = vmatpush1.xpose.msra.mxu0 0.0
      %426 = vmatprep.subr.mxu0 0.0
      %427 = vmatpush1.xpose.msra.mxu0 0.0
      %428 = vmatprep.subr.mxu0 0.0
      %429 = vmatpush1.xpose.msra.mxu0 0.0
      %430 = vmatprep.subr.mxu0 0.0
      %431 = vmatpush1.xpose.msra.mxu0 0.0
      %432 = vmatprep.subr.mxu0 0.0
      %433 = vmatpush1.xpose.msra.mxu0 0.0
      %434 = vmatprep.subr.mxu0 0.0
      %435 = vmatpush1.xpose.msra.mxu0 0.0
      %436 = vmatprep.subr.mxu0 0.0
      %437 = vmatpush1.xpose.msra.mxu0 0.0
      %438 = vmatprep.subr.mxu0 0.0
      %439 = vmatpush1.xpose.msra.mxu0 0.0
      %440 = vmatprep.subr.mxu0 0.0
      %441 = vmatpush1.xpose.msra.mxu0 0.0
      %442 = vmatprep.subr.mxu0 0.0
      %443 = vmatpush1.xpose.msra.mxu0 0.0
      %444 = vmatprep.subr.mxu0 0.0
      %445 = vmatpush1.xpose.msra.mxu0 0.0
      %446 = vmatprep.subr.mxu0 0.0
      %447 = vmatpush1.xpose.msra.mxu0 0.0
      %448 = vmatprep.subr.mxu0 0.0
      %449 = vmatpush1.xpose.msra.mxu0 0.0
      %450 = vmatprep.mubr.f32.mxu0 0.0
      %451 = vmatmul.mubr.f32.gmra.mrb[0].mxu0 %v381
      %v452 = vpop.f32.mrb[0].mxu0
      %v453 = vadd.f32 0.0, %v452
      %v454 = vpop.f32.mrb[0].mxu0
      %455 = vdwg.mxu0
      %v457 = vsel %vm227, %v218, 0
      %v460 = vsel %vm227, %v222, 0
      %462 = vmatprep.subr.mxu0 0.0
      %463 = vmatpush1.xpose.msra.mxu0 %v460
      %464 = vmatprep.subr.mxu0 0.0
      %465 = vmatpush1.xpose.msra.mxu0 0.0
      %466 = vmatprep.subr.mxu0 0.0
      %467 = vmatpush1.xpose.msra.mxu0 0.0
      %468 = vmatprep.subr.mxu0 0.0
      %469 = vmatpush1.xpose.msra.mxu0 0.0
      %470 = vmatprep.subr.mxu0 0.0
      %471 = vmatpush1.xpose.msra.mxu0 0.0
      %472 = vmatprep.subr.mxu0 0.0
      %473 = vmatpush1.xpose.msra.mxu0 0.0
      %474 = vmatprep.subr.mxu0 0.0
      %475 = vmatpush1.xpose.msra.mxu0 0.0
      %476 = vmatprep.subr.mxu0 0.0
      %477 = vmatpush1.xpose.msra.mxu0 0.0
      %478 = vmatprep.subr.mxu0 0.0
      %479 = vmatpush1.xpose.msra.mxu0 0.0
      %480 = vmatprep.subr.mxu0 0.0
      %481 = vmatpush1.xpose.msra.mxu0 0.0
      %482 = vmatprep.subr.mxu0 0.0
      %483 = vmatpush1.xpose.msra.mxu0 0.0
      %484 = vmatprep.subr.mxu0 0.0
      %485 = vmatpush1.xpose.msra.mxu0 0.0
      %486 = vmatprep.subr.mxu0 0.0
      %487 = vmatpush1.xpose.msra.mxu0 0.0
      %488 = vmatprep.subr.mxu0 0.0
      %489 = vmatpush1.xpose.msra.mxu0 0.0
      %490 = vmatprep.subr.mxu0 0.0
      %491 = vmatpush1.xpose.msra.mxu0 0.0
      %492 = vmatprep.subr.mxu0 0.0
      %493 = vmatpush1.xpose.msra.mxu0 0.0
      %494 = vmatprep.subr.mxu0 0.0
      %495 = vmatpush1.xpose.msra.mxu0 0.0
      %496 = vmatprep.subr.mxu0 0.0
      %497 = vmatpush1.xpose.msra.mxu0 0.0
      %498 = vmatprep.subr.mxu0 0.0
      %499 = vmatpush1.xpose.msra.mxu0 0.0
      %500 = vmatprep.subr.mxu0 0.0
      %501 = vmatpush1.xpose.msra.mxu0 0.0
      %502 = vmatprep.subr.mxu0 0.0
      %503 = vmatpush1.xpose.msra.mxu0 0.0
      %504 = vmatprep.subr.mxu0 0.0
      %505 = vmatpush1.xpose.msra.mxu0 0.0
      %506 = vmatprep.subr.mxu0 0.0
      %507 = vmatpush1.xpose.msra.mxu0 0.0
      %508 = vmatprep.subr.mxu0 0.0
      %509 = vmatpush1.xpose.msra.mxu0 0.0
      %510 = vmatprep.subr.mxu0 0.0
      %511 = vmatpush1.xpose.msra.mxu0 0.0
      %512 = vmatprep.subr.mxu0 0.0
      %513 = vmatpush1.xpose.msra.mxu0 0.0
      %514 = vmatprep.subr.mxu0 0.0
      %515 = vmatpush1.xpose.msra.mxu0 0.0
      %516 = vmatprep.subr.mxu0 0.0
      %517 = vmatpush1.xpose.msra.mxu0 0.0
      %518 = vmatprep.subr.mxu0 0.0
      %519 = vmatpush1.xpose.msra.mxu0 0.0
      %520 = vmatprep.subr.mxu0 0.0
      %521 = vmatpush1.xpose.msra.mxu0 0.0
      %522 = vmatprep.subr.mxu0 0.0
      %523 = vmatpush1.xpose.msra.mxu0 0.0
      %524 = vmatprep.subr.mxu0 0.0
      %525 = vmatpush1.xpose.msra.mxu0 0.0
      %526 = vmatprep.mubr.f32.mxu0 0.0
      %527 = vmatmul.mubr.f32.gmra.mrb[0].mxu0 %v457
      %v528 = vpop.f32.mrb[0].mxu0
      %v529 = vadd.f32 0.0, %v528
      %v530 = vpop.f32.mrb[0].mxu0
      %531 = vdwg.mxu0
      %v532 = vsel %vm227, %v301, -inf
      %533 = vmax.xlane.f32.xlu0 %v532
      %v534 = vpop.xlane.xlu0 %533
      %v535 = vsel %vm227, %v377, -inf
      %536 = vmax.xlane.f32.xlu0 %v535
      %v537 = vpop.xlane.xlu0 %536
      %v538 = vsel %vm227, %v453, -inf
      %539 = vmax.xlane.f32.xlu0 %v538
      %v540 = vpop.xlane.xlu0 %539
      %v541 = vsel %vm227, %v529, -inf
      %542 = vmax.xlane.f32.xlu0 %v541
      %v543 = vpop.xlane.xlu0 %542
      %v544 = vsub.f32 %v301, %v534
      %v545 = vsub.f32 %v377, %v537
      %v546 = vsub.f32 %v453, %v540
      %v547 = vsub.f32 %v529, %v543
      %v548 = vmul.f32 %v544, 1.442695
      %v549 = vpow.pop %v548
      %v550 = vmul.f32 %v545, 1.442695
      %v551 = vpow.pop %v550
      %v552 = vmul.f32 %v546, 1.442695
      %v553 = vpow.pop %v552
      %v554 = vmul.f32 %v547, 1.442695
      %v555 = vpow.pop %v554
      %v556 = vsel %vm227, %v549, 0.0
      %557 = vadd.xlane.f32.xlu0 %v556
      %v558 = vpop.xlane.xlu0 %557
      %v559 = vsel %vm227, %v551, 0.0
      %560 = vadd.xlane.f32.xlu0 %v559
      %v561 = vpop.xlane.xlu0 %560
      %v562 = vsel %vm227, %v553, 0.0
      %563 = vadd.xlane.f32.xlu0 %v562
      %v564 = vpop.xlane.xlu0 %563
      %v565 = vsel %vm227, %v555, 0.0
      %566 = vadd.xlane.f32.xlu0 %v565
      %v567 = vpop.xlane.xlu0 %566
      %v568 = vrcp.pop %v558
      %v569 = vrcp.pop %v561
      %v570 = vrcp.pop %v564
      %v571 = vrcp.pop %v567
      %v572 = vmul.f32 %v549, %v568
      %v573 = vmul.f32 %v551, %v569
      %v574 = vmul.f32 %v553, %v570
      %v575 = vmul.f32 %v555, %v571
      %v577 = vsel %vm227, %v572, 0
      %579 = vmatprep.subr.mxu0 0.0
      %580 = vmatpush1.msra.mxu0 %v223
      %581 = vmatprep.subr.mxu0 0.0
      %582 = vmatpush1.msra.mxu0 0.0
      %583 = vmatprep.subr.mxu0 0.0
      %584 = vmatpush1.msra.mxu0 0.0
      %585 = vmatprep.subr.mxu0 0.0
      %586 = vmatpush1.msra.mxu0 0.0
      %587 = vmatprep.subr.mxu0 0.0
      %588 = vmatpush1.msra.mxu0 0.0
      %589 = vmatprep.subr.mxu0 0.0
      %590 = vmatpush1.msra.mxu0 0.0
      %591 = vmatprep.subr.mxu0 0.0
      %592 = vmatpush1.msra.mxu0 0.0
      %593 = vmatprep.subr.mxu0 0.0
      %594 = vmatpush1.msra.mxu0 0.0
      %595 = vmatprep.subr.mxu0 0.0
      %596 = vmatpush1.msra.mxu0 0.0
      %597 = vmatprep.subr.mxu0 0.0
      %598 = vmatpush1.msra.mxu0 0.0
      %599 = vmatprep.subr.mxu0 0.0
      %600 = vmatpush1.msra.mxu0 0.0
      %601 = vmatprep.subr.mxu0 0.0
      %602 = vmatpush1.msra.mxu0 0.0
      %603 = vmatprep.subr.mxu0 0.0
      %604 = vmatpush1.msra.mxu0 0.0
      %605 = vmatprep.subr.mxu0 0.0
      %606 = vmatpush1.msra.mxu0 0.0
      %607 = vmatprep.subr.mxu0 0.0
      %608 = vmatpush1.msra.mxu0 0.0
      %609 = vmatprep.subr.mxu0 0.0
      %610 = vmatpush1.msra.mxu0 0.0
      %611 = vmatprep.subr.mxu0 0.0
      %612 = vmatpush1.msra.mxu0 0.0
      %613 = vmatprep.subr.mxu0 0.0
      %614 = vmatpush1.msra.mxu0 0.0
      %615 = vmatprep.subr.mxu0 0.0
      %616 = vmatpush1.msra.mxu0 0.0
      %617 = vmatprep.subr.mxu0 0.0
      %618 = vmatpush1.msra.mxu0 0.0
      %619 = vmatprep.subr.mxu0 0.0
      %620 = vmatpush1.msra.mxu0 0.0
      %621 = vmatprep.subr.mxu0 0.0
      %622 = vmatpush1.msra.mxu0 0.0
      %623 = vmatprep.subr.mxu0 0.0
      %624 = vmatpush1.msra.mxu0 0.0
      %625 = vmatprep.subr.mxu0 0.0
      %626 = vmatpush1.msra.mxu0 0.0
      %627 = vmatprep.subr.mxu0 0.0
      %628 = vmatpush1.msra.mxu0 0.0
      %629 = vmatprep.subr.mxu0 0.0
      %630 = vmatpush1.msra.mxu0 0.0
      %631 = vmatprep.subr.mxu0 0.0
      %632 = vmatpush1.msra.mxu0 0.0
      %633 = vmatprep.subr.mxu0 0.0
      %634 = vmatpush1.msra.mxu0 0.0
      %635 = vmatprep.subr.mxu0 0.0
      %636 = vmatpush1.msra.mxu0 0.0
      %637 = vmatprep.subr.mxu0 0.0
      %638 = vmatpush1.msra.mxu0 0.0
      %639 = vmatprep.subr.mxu0 0.0
      %640 = vmatpush1.msra.mxu0 0.0
      %641 = vmatprep.subr.mxu0 0.0
      %642 = vmatpush1.msra.mxu0 0.0
      %643 = vmatprep.mubr.f32.mxu0 0.0
      %644 = vmatmul.mubr.f32.gmra.mrb[0].mxu0 %v577
      %v645 = vpop.f32.mrb[0].mxu0
      %v646 = vadd.f32 0.0, %v645
      %v647 = vpop.f32.mrb[0].mxu0
      %648 = vdwg.mxu0
      %v650 = vsel %vm227, %v573, 0
      %652 = vmatprep.subr.mxu0 0.0
      %653 = vmatpush1.msra.mxu0 %v224
      %654 = vmatprep.subr.mxu0 0.0
      %655 = vmatpush1.msra.mxu0 0.0
      %656 = vmatprep.subr.mxu0 0.0
      %657 = vmatpush1.msra.mxu0 0.0
      %658 = vmatprep.subr.mxu0 0.0
      %659 = vmatpush1.msra.mxu0 0.0
      %660 = vmatprep.subr.mxu0 0.0
      %661 = vmatpush1.msra.mxu0 0.0
      %662 = vmatprep.subr.mxu0 0.0
      %663 = vmatpush1.msra.mxu0 0.0
      %664 = vmatprep.subr.mxu0 0.0
      %665 = vmatpush1.msra.mxu0 0.0
      %666 = vmatprep.subr.mxu0 0.0
      %667 = vmatpush1.msra.mxu0 0.0
      %668 = vmatprep.subr.mxu0 0.0
      %669 = vmatpush1.msra.mxu0 0.0
      %670 = vmatprep.subr.mxu0 0.0
      %671 = vmatpush1.msra.mxu0 0.0
      %672 = vmatprep.subr.mxu0 0.0
      %673 = vmatpush1.msra.mxu0 0.0
      %674 = vmatprep.subr.mxu0 0.0
      %675 = vmatpush1.msra.mxu0 0.0
      %676 = vmatprep.subr.mxu0 0.0
      %677 = vmatpush1.msra.mxu0 0.0
      %678 = vmatprep.subr.mxu0 0.0
      %679 = vmatpush1.msra.mxu0 0.0
      %680 = vmatprep.subr.mxu0 0.0
      %681 = vmatpush1.msra.mxu0 0.0
      %682 = vmatprep.subr.mxu0 0.0
      %683 = vmatpush1.msra.mxu0 0.0
      %684 = vmatprep.subr.mxu0 0.0
      %685 = vmatpush1.msra.mxu0 0.0
      %686 = vmatprep.subr.mxu0 0.0
      %687 = vmatpush1.msra.mxu0 0.0
      %688 = vmatprep.subr.mxu0 0.0
      %689 = vmatpush1.msra.mxu0 0.0
      %690 = vmatprep.subr.mxu0 0.0
      %691 = vmatpush1.msra.mxu0 0.0
      %692 = vmatprep.subr.mxu0 0.0
      %693 = vmatpush1.msra.mxu0 0.0
      %694 = vmatprep.subr.mxu0 0.0
      %695 = vmatpush1.msra.mxu0 0.0
      %696 = vmatprep.subr.mxu0 0.0
      %697 = vmatpush1.msra.mxu0 0.0
      %698 = vmatprep.subr.mxu0 0.0
      %699 = vmatpush1.msra.mxu0 0.0
      %700 = vmatprep.subr.mxu0 0.0
      %701 = vmatpush1.msra.mxu0 0.0
      %702 = vmatprep.subr.mxu0 0.0
      %703 = vmatpush1.msra.mxu0 0.0
      %704 = vmatprep.subr.mxu0 0.0
      %705 = vmatpush1.msra.mxu0 0.0
      %706 = vmatprep.subr.mxu0 0.0
      %707 = vmatpush1.msra.mxu0 0.0
      %708 = vmatprep.subr.mxu0 0.0
      %709 = vmatpush1.msra.mxu0 0.0
      %710 = vmatprep.subr.mxu0 0.0
      %711 = vmatpush1.msra.mxu0 0.0
      %712 = vmatprep.subr.mxu0 0.0
      %713 = vmatpush1.msra.mxu0 0.0
      %714 = vmatprep.subr.mxu0 0.0
      %715 = vmatpush1.msra.mxu0 0.0
      %716 = vmatprep.mubr.f32.mxu0 0.0
      %717 = vmatmul.mubr.f32.gmra.mrb[0].mxu0 %v650
      %v718 = vpop.f32.mrb[0].mxu0
      %v719 = vadd.f32 0.0, %v718
      %v720 = vpop.f32.mrb[0].mxu0
      %721 = vdwg.mxu0
      %v723 = vsel %vm227, %v574, 0
      %725 = vmatprep.subr.mxu0 0.0
      %726 = vmatpush1.msra.mxu0 %v225
      %727 = vmatprep.subr.mxu0 0.0
      %728 = vmatpush1.msra.mxu0 0.0
      %729 = vmatprep.subr.mxu0 0.0
      %730 = vmatpush1.msra.mxu0 0.0
      %731 = vmatprep.subr.mxu0 0.0
      %732 = vmatpush1.msra.mxu0 0.0
      %733 = vmatprep.subr.mxu0 0.0
      %734 = vmatpush1.msra.mxu0 0.0
      %735 = vmatprep.subr.mxu0 0.0
      %736 = vmatpush1.msra.mxu0 0.0
      %737 = vmatprep.subr.mxu0 0.0
      %738 = vmatpush1.msra.mxu0 0.0
      %739 = vmatprep.subr.mxu0 0.0
      %740 = vmatpush1.msra.mxu0 0.0
      %741 = vmatprep.subr.mxu0 0.0
      %742 = vmatpush1.msra.mxu0 0.0
      %743 = vmatprep.subr.mxu0 0.0
      %744 = vmatpush1.msra.mxu0 0.0
      %745 = vmatprep.subr.mxu0 0.0
      %746 = vmatpush1.msra.mxu0 0.0
      %747 = vmatprep.subr.mxu0 0.0
      %748 = vmatpush1.msra.mxu0 0.0
      %749 = vmatprep.subr.mxu0 0.0
      %750 = vmatpush1.msra.mxu0 0.0
      %751 = vmatprep.subr.mxu0 0.0
      %752 = vmatpush1.msra.mxu0 0.0
      %753 = vmatprep.subr.mxu0 0.0
      %754 = vmatpush1.msra.mxu0 0.0
      %755 = vmatprep.subr.mxu0 0.0
      %756 = vmatpush1.msra.mxu0 0.0
      %757 = vmatprep.subr.mxu0 0.0
      %758 = vmatpush1.msra.mxu0 0.0
      %759 = vmatprep.subr.mxu0 0.0
      %760 = vmatpush1.msra.mxu0 0.0
      %761 = vmatprep.subr.mxu0 0.0
      %762 = vmatpush1.msra.mxu0 0.0
      %763 = vmatprep.subr.mxu0 0.0
      %764 = vmatpush1.msra.mxu0 0.0
      %765 = vmatprep.subr.mxu0 0.0
      %766 = vmatpush1.msra.mxu0 0.0
      %767 = vmatprep.subr.mxu0 0.0
      %768 = vmatpush1.msra.mxu0 0.0
      %769 = vmatprep.subr.mxu0 0.0
      %770 = vmatpush1.msra.mxu0 0.0
      %771 = vmatprep.subr.mxu0 0.0
      %772 = vmatpush1.msra.mxu0 0.0
      %773 = vmatprep.subr.mxu0 0.0
      %774 = vmatpush1.msra.mxu0 0.0
      %775 = vmatprep.subr.mxu0 0.0
      %776 = vmatpush1.msra.mxu0 0.0
      %777 = vmatprep.subr.mxu0 0.0
      %778 = vmatpush1.msra.mxu0 0.0
      %779 = vmatprep.subr.mxu0 0.0
      %780 = vmatpush1.msra.mxu0 0.0
      %781 = vmatprep.subr.mxu0 0.0
      %782 = vmatpush1.msra.mxu0 0.0
      %783 = vmatprep.subr.mxu0 0.0
      %784 = vmatpush1.msra.mxu0 0.0
      %785 = vmatprep.subr.mxu0 0.0
      %786 = vmatpush1.msra.mxu0 0.0
      %787 = vmatprep.subr.mxu0 0.0
      %788 = vmatpush1.msra.mxu0 0.0
      %789 = vmatprep.mubr.f32.mxu0 0.0
      %790 = vmatmul.mubr.f32.gmra.mrb[0].mxu0 %v723
      %v791 = vpop.f32.mrb[0].mxu0
      %v792 = vadd.f32 0.0, %v791
      %v793 = vpop.f32.mrb[0].mxu0
      %794 = vdwg.mxu0
      %v796 = vsel %vm227, %v575, 0
      %798 = vmatprep.subr.mxu0 0.0
      %799 = vmatpush1.msra.mxu0 %v226
      %800 = vmatprep.subr.mxu0 0.0
      %801 = vmatpush1.msra.mxu0 0.0
      %802 = vmatprep.subr.mxu0 0.0
      %803 = vmatpush1.msra.mxu0 0.0
      %804 = vmatprep.subr.mxu0 0.0
      %805 = vmatpush1.msra.mxu0 0.0
      %806 = vmatprep.subr.mxu0 0.0
      %807 = vmatpush1.msra.mxu0 0.0
      %808 = vmatprep.subr.mxu0 0.0
      %809 = vmatpush1.msra.mxu0 0.0
      %810 = vmatprep.subr.mxu0 0.0
      %811 = vmatpush1.msra.mxu0 0.0
      %812 = vmatprep.subr.mxu0 0.0
      %813 = vmatpush1.msra.mxu0 0.0
      %814 = vmatprep.subr.mxu0 0.0
      %815 = vmatpush1.msra.mxu0 0.0
      %816 = vmatprep.subr.mxu0 0.0
      %817 = vmatpush1.msra.mxu0 0.0
      %818 = vmatprep.subr.mxu0 0.0
      %819 = vmatpush1.msra.mxu0 0.0
      %820 = vmatprep.subr.mxu0 0.0
      %821 = vmatpush1.msra.mxu0 0.0
      %822 = vmatprep.subr.mxu0 0.0
      %823 = vmatpush1.msra.mxu0 0.0
      %824 = vmatprep.subr.mxu0 0.0
      %825 = vmatpush1.msra.mxu0 0.0
      %826 = vmatprep.subr.mxu0 0.0
      %827 = vmatpush1.msra.mxu0 0.0
      %828 = vmatprep.subr.mxu0 0.0
      %829 = vmatpush1.msra.mxu0 0.0
      %830 = vmatprep.subr.mxu0 0.0
      %831 = vmatpush1.msra.mxu0 0.0
      %832 = vmatprep.subr.mxu0 0.0
      %833 = vmatpush1.msra.mxu0 0.0
      %834 = vmatprep.subr.mxu0 0.0
      %835 = vmatpush1.msra.mxu0 0.0
      %836 = vmatprep.subr.mxu0 0.0
      %837 = vmatpush1.msra.mxu0 0.0
      %838 = vmatprep.subr.mxu0 0.0
      %839 = vmatpush1.msra.mxu0 0.0
      %840 = vmatprep.subr.mxu0 0.0
      %841 = vmatpush1.msra.mxu0 0.0
      %842 = vmatprep.subr.mxu0 0.0
      %843 = vmatpush1.msra.mxu0 0.0
      %844 = vmatprep.subr.mxu0 0.0
      %845 = vmatpush1.msra.mxu0 0.0
      %846 = vmatprep.subr.mxu0 0.0
      %847 = vmatpush1.msra.mxu0 0.0
      %848 = vmatprep.subr.mxu0 0.0
      %849 = vmatpush1.msra.mxu0 0.0
      %850 = vmatprep.subr.mxu0 0.0
      %851 = vmatpush1.msra.mxu0 0.0
      %852 = vmatprep.subr.mxu0 0.0
      %853 = vmatpush1.msra.mxu0 0.0
      %854 = vmatprep.subr.mxu0 0.0
      %855 = vmatpush1.msra.mxu0 0.0
      %856 = vmatprep.subr.mxu0 0.0
      %857 = vmatpush1.msra.mxu0 0.0
      %858 = vmatprep.subr.mxu0 0.0
      %859 = vmatpush1.msra.mxu0 0.0
      %860 = vmatprep.subr.mxu0 0.0
      %861 = vmatpush1.msra.mxu0 0.0
      %862 = vmatprep.mubr.f32.mxu0 0.0
      %863 = vmatmul.mubr.f32.gmra.mrb[0].mxu0 %v796
      %v864 = vpop.f32.mrb[0].mxu0
      %v865 = vadd.f32 0.0, %v864
      %v866 = vpop.f32.mrb[0].mxu0
      %867 = vdwg.mxu0
      %868 = vst.msk [vmem:[%s210] sm:$0xff] %vm227, %v646
      %869 = vst.msk [vmem:[%s210 + $0x8] sm:$0xff] %vm227, %v719
      %870 = vst.msk [vmem:[%s210 + $0x10] sm:$0xff] %vm227, %v792
      %871 = vst.msk [vmem:[%s210 + $0x18] sm:$0xff] %vm227, %v865
      %p872 = scmp.lt.s32.totalorder %s14, 1
      %s873 = scalar_select %p872, %s14, 1
      %s874 = smul.addr %s873, 4
      %s875 = smul.addr %s874, 8
      %s876 = scalar_lea.vmem %s3, %s875
      // Predicated region
      $region33: #{encoder_layer.4} parent=31 // pred_check
        %p877 = pneg %p110
      $region34: #{encoder_layer.4} parent=31 // pred_check_branch
        %879 = sbr.rel (%p877) target = $region36
      $region35: #{encoder_layer.4} parent=31 // pred_region
        _
      $region36: #{encoder_layer.4} parent=31 // pred_fallthru
        _
    $region32: #{encoder_layer.4} parent=5 // pred_fallthru
      _
    %p880 = scmp.le.s32.totalorder 2, %s9
    // Predicated region
    $region37: #{encoder_layer.4} parent=5 // pred_check
      %p881 = pneg %p880
    $region38: #{encoder_layer.4} parent=5 // pred_check_branch
      %883 = sbr.rel (%p881) target = $region40
    $region39: #{encoder_layer.4} parent=5 // pred_region
      %s884 = ssub.s32 %s9, 2
      // Predicated region
      $region41: #{encoder_layer.4} parent=39 // pred_check
        %p885 = pneg %p116
      $region42: #{encoder_layer.4} parent=39 // pred_check_branch
        %887 = sbr.rel (%p885) target = $region44
      $region43: #{encoder_layer.4} parent=39 // pred_region
        %p888 = scmp.lt.s32.totalorder %s15, 1
        %s889 = scalar_select %p888, %s15, 1
        %s890 = smul.addr %s889, 4
        %s891 = smul.addr %s890, 8
        %s892 = scalar_lea.vmem %s3, %s891
      $region44: #{encoder_layer.4} parent=39 // pred_fallthru
        _
    $region40: #{encoder_layer.4} parent=5 // pred_fallthru
      _
  $region6: #{encoder_layer.4} parent=0 // loop_footer
    %s13 = sadd.s32 1, %s9
  $region7: #{encoder_layer.4} parent=0 // loop_footer_branch
    %8 = sbr.rel target = $region3
  $region8: #{encoder_layer.4} parent=0 // loop_exit
    _

// kernel: encoder_layer.5
$region0: #{encoder_layer.5}
  #allocation0 [shape = 'u32[]', space=smem, size = 0x4, offset = 0x4, fixed_abs, tag = 'smem constant byte address 0x4 - core index']
  #allocation1 [shape = 'u32[144,128]{1,0:T(1,128)}', space=vmem, size = 0x12000, scoped, tag = 'internal scratch']
  %s0 = inlined_call_operand.vmem [shape: f32[16,32], index: 0, kind: input, shape index: {}]
  %s1 = inlined_call_operand.vmem [shape: f32[16,32], index: 1, kind: input, shape index: {}]
  %s2 = inlined_call_operand.vmem [shape: f32[32,32], index: 2, kind: input, shape index: {}]
  %s3 = inlined_call_operand.vmem [shape: f32[1,32], index: 3, kind: input, shape index: {}]
  %s4 = inlined_call_operand.vmem [shape: f32[1,32], index: 4, kind: input, shape index: {}]
  %s5 = inlined_call_operand.vmem [shape: f32[1,32], index: 5, kind: input, shape index: {}]
  %s6 = inlined_call_operand.vmem [shape: f32[32,64], index: 6, kind: input, shape index: {}]
  %s7 = inlined_call_operand.vmem [shape: f32[1,64], index: 7, kind: input, shape index: {}]
  %s8 = inlined_call_operand.vmem [shape: f32[64,32], index: 8, kind: input, shape index: {}]
  %s9 = inlined_call_operand.vmem [shape: f32[1,32], index: 9, kind: input, shape index: {}]
  %s10 = inlined_call_operand.vmem [shape: f32[1,32], index: 10, kind: input, shape index: {}]
  %s11 = inlined_call_operand.vmem [shape: f32[1,32], index: 11, kind: input, shape index: {}]
  %s12 = inlined_call_operand.hbm [shape: f32[16,32], index: 12, kind: output, shape index: {}]
  %s13 = sld [smem:[#allocation0]]
  $region58: #{encoder_layer.5} parent=0
    _
  %s15 = ssub.s32 1, %s13
  %s16 = scalar_select 0, %s15, %s13
  $region1: #{encoder_layer.5} parent=0
    #allocation2 [shape = 'u8[8192]{0}', space=vmem, size = 0x2000, scoped, tag = 'output window, operand 0, single buffered']
    #allocation3 [shape = 's32[1]{0}', space=sflag, size = 0x4, scoped, tag = 'scoped memory for encoder_layer.5']
    %17 = vsyncpa [#allocation3], 0
    // Predicated region
    $region2: #{encoder_layer.5} parent=1 // pred_check
      _
    $region3: #{encoder_layer.5} parent=1 // pred_check_branch
      %19 = sbr.rel (0) target = $region5
    $region4: #{encoder_layer.5} parent=1 // pred_region
      _
    $region5: #{encoder_layer.5} parent=1 // pred_fallthru
      _
    // Predicated region
    $region6: #{encoder_layer.5} parent=1 // pred_check
      _
    $region7: #{encoder_layer.5} parent=1 // pred_check_branch
      %21 = sbr.rel (0) target = $region9
    $region8: #{encoder_layer.5} parent=1 // pred_region
      _
    $region9: #{encoder_layer.5} parent=1 // pred_fallthru
      _
    // Predicated region
    $region10: #{encoder_layer.5} parent=1 // pred_check
      _
    $region11: #{encoder_layer.5} parent=1 // pred_check_branch
      %23 = sbr.rel (0) target = $region13
    $region12: #{encoder_layer.5} parent=1 // pred_region
      _
    $region13: #{encoder_layer.5} parent=1 // pred_fallthru
      _
    // Predicated region
    $region14: #{encoder_layer.5} parent=1 // pred_check
      _
    $region15: #{encoder_layer.5} parent=1 // pred_check_branch
      %25 = sbr.rel (0) target = $region17
    $region16: #{encoder_layer.5} parent=1 // pred_region
      _
    $region17: #{encoder_layer.5} parent=1 // pred_fallthru
      _
    // Predicated region
    $region18: #{encoder_layer.5} parent=1 // pred_check
      _
    $region19: #{encoder_layer.5} parent=1 // pred_check_branch
      %27 = sbr.rel (0) target = $region21
    $region20: #{encoder_layer.5} parent=1 // pred_region
      _
    $region21: #{encoder_layer.5} parent=1 // pred_fallthru
      _
    // Predicated region
    $region22: #{encoder_layer.5} parent=1 // pred_check
      _
    $region23: #{encoder_layer.5} parent=1 // pred_check_branch
      %29 = sbr.rel (0) target = $region25
    $region24: #{encoder_layer.5} parent=1 // pred_region
      _
    $region25: #{encoder_layer.5} parent=1 // pred_fallthru
      _
    // Predicated region
    $region26: #{encoder_layer.5} parent=1 // pred_check
      _
    $region27: #{encoder_layer.5} parent=1 // pred_check_branch
      %31 = sbr.rel (0) target = $region29
    $region28: #{encoder_layer.5} parent=1 // pred_region
      _
    $region29: #{encoder_layer.5} parent=1 // pred_fallthru
      _
    // Predicated region
    $region30: #{encoder_layer.5} parent=1 // pred_check
      _
    $region31: #{encoder_layer.5} parent=1 // pred_check_branch
      %33 = sbr.rel (0) target = $region33
    $region32: #{encoder_layer.5} parent=1 // pred_region
      _
    $region33: #{encoder_layer.5} parent=1 // pred_fallthru
      _
    // Predicated region
    $region34: #{encoder_layer.5} parent=1 // pred_check
      _
    $region35: #{encoder_layer.5} parent=1 // pred_check_branch
      %35 = sbr.rel (0) target = $region37
    $region36: #{encoder_layer.5} parent=1 // pred_region
      _
    $region37: #{encoder_layer.5} parent=1 // pred_fallthru
      _
    // Predicated region
    $region38: #{encoder_layer.5} parent=1 // pred_check
      _
    $region39: #{encoder_layer.5} parent=1 // pred_check_branch
      %37 = sbr.rel (0) target = $region41
    $region40: #{encoder_layer.5} parent=1 // pred_region
      _
    $region41: #{encoder_layer.5} parent=1 // pred_fallthru
      _
    // Predicated region
    $region42: #{encoder_layer.5} parent=1 // pred_check
      _
    $region43: #{encoder_layer.5} parent=1 // pred_check_branch
      %39 = sbr.rel (0) target = $region45
    $region44: #{encoder_layer.5} parent=1 // pred_region
      _
    $region45: #{encoder_layer.5} parent=1 // pred_fallthru
      _
    // Predicated region
    $region46: #{encoder_layer.5} parent=1 // pred_check
      _
    $region47: #{encoder_layer.5} parent=1 // pred_check_branch
      %41 = sbr.rel (0) target = $region49
    $region48: #{encoder_layer.5} parent=1 // pred_region
      _
    $region49: #{encoder_layer.5} parent=1 // pred_fallthru
      _
    %v42 = vld [vmem:[%s0] sm:$0xff]
    %v43 = vld [vmem:[%s0 + $0x8] sm:$0xff]
    %v44 = vld [vmem:[%s1] sm:$0xff]
    %v45 = vld [vmem:[%s1 + $0x8] sm:$0xff]
    %v46 = vld [vmem:[%s2] sm:$0xff]
    %v47 = vld [vmem:[%s2 + $0x8] sm:$0xff]
    %v48 = vld [vmem:[%s2 + $0x10] sm:$0xff]
    %v49 = vld [vmem:[%s2 + $0x18] sm:$0xff]
    %v50 = vld [vmem:[%s3] sm:$0x1]
    %v52 = vlaneseq
    %v53 = vshrl.u32 %v52, 7
    %v54 = vsub.s32 0, %v53
    %v55 = vrot.slane %v50, %v54
    %vm57 = vcmask 261120
    %v59 = vsel %vm57, %v44, 0
    %v62 = vsel %vm57, %v45, 0
    %64 = vmatprep.subr.mxu0 0.0
    %65 = vmatpush1.msra.mxu0 %v46
    %66 = vmatprep.subr.mxu0 0.0
    %67 = vmatpush1.msra.mxu0 %v47
    %68 = vmatprep.subr.mxu0 0.0
    %69 = vmatpush1.msra.mxu0 %v48
    %70 = vmatprep.subr.mxu0 0.0
    %71 = vmatpush1.msra.mxu0 %v49
    %72 = vmatprep.subr.mxu0 0.0
    %73 = vmatpush1.msra.mxu0 0.0
    %74 = vmatprep.subr.mxu0 0.0
    %75 = vmatpush1.msra.mxu0 0.0
    %76 = vmatprep.subr.mxu0 0.0
    %77 = vmatpush1.msra.mxu0 0.0
    %78 = vmatprep.subr.mxu0 0.0
    %79 = vmatpush1.msra.mxu0 0.0
    %80 = vmatprep.subr.mxu0 0.0
    %81 = vmatpush1.msra.mxu0 0.0
    %82 = vmatprep.subr.mxu0 0.0
    %83 = vmatpush1.msra.mxu0 0.0
    %84 = vmatprep.subr.mxu0 0.0
    %85 = vmatpush1.msra.mxu0 0.0
    %86 = vmatprep.subr.mxu0 0.0
    %87 = vmatpush1.msra.mxu0 0.0
    %88 = vmatprep.subr.mxu0 0.0
    %89 = vmatpush1.msra.mxu0 0.0
    %90 = vmatprep.subr.mxu0 0.0
    %91 = vmatpush1.msra.mxu0 0.0
    %92 = vmatprep.subr.mxu0 0.0
    %93 = vmatpush1.msra.mxu0 0.0
    %94 = vmatprep.subr.mxu0 0.0
    %95 = vmatpush1.msra.mxu0 0.0
    %96 = vmatprep.subr.mxu0 0.0
    %97 = vmatpush1.msra.mxu0 0.0
    %98 = vmatprep.subr.mxu0 0.0
    %99 = vmatpush1.msra.mxu0 0.0
    %100 = vmatprep.subr.mxu0 0.0
    %101 = vmatpush1.msra.mxu0 0.0
    %102 = vmatprep.subr.mxu0 0.0
    %103 = vmatpush1.msra.mxu0 0.0
    %104 = vmatprep.subr.mxu0 0.0
    %105 = vmatpush1.msra.mxu0 0.0
    %106 = vmatprep.subr.mxu0 0.0
    %107 = vmatpush1.msra.mxu0 0.0
    %108 = vmatprep.subr.mxu0 0.0
    %109 = vmatpush1.msra.mxu0 0.0
    %110 = vmatprep.subr.mxu0 0.0
    %111 = vmatpush1.msra.mxu0 0.0
    %112 = vmatprep.subr.mxu0 0.0
    %113 = vmatpush1.msra.mxu0 0.0
    %114 = vmatprep.subr.mxu0 0.0
    %115 = vmatpush1.msra.mxu0 0.0
    %116 = vmatprep.subr.mxu0 0.0
    %117 = vmatpush1.msra.mxu0 0.0
    %118 = vmatprep.subr.mxu0 0.0
    %119 = vmatpush1.msra.mxu0 0.0
    %120 = vmatprep.subr.mxu0 0.0
    %121 = vmatpush1.msra.mxu0 0.0
    %122 = vmatprep.subr.mxu0 0.0
    %123 = vmatpush1.msra.mxu0 0.0
    %124 = vmatprep.subr.mxu0 0.0
    %125 = vmatpush1.msra.mxu0 0.0
    %126 = vmatprep.subr.mxu0 0.0
    %127 = vmatpush1.msra.mxu0 0.0
    %128 = vmatprep.mubr.f32.mxu0 0.0
    %129 = vmatmul.mubr.f32.gmra.mrb[0].mxu0 %v59
    %v130 = vpop.f32.mrb[0].mxu0
    %v131 = vadd.f32 %v55, %v130
    %v132 = vpop.f32.mrb[0].mxu0
    %133 = vmatprep.mubr.f32.mxu0 0.0
    %134 = vmatmul.mubr.f32.gmra.mrb[0].mxu0 %v62
    %v135 = vpop.f32.mrb[0].mxu0
    %v136 = vadd.f32 %v55, %v135
    %v137 = vpop.f32.mrb[0].mxu0
    %138 = vdwg.mxu0
    %v139 = vadd.f32 %v42, %v131
    %v140 = vadd.f32 %v43, %v136
    %v141 = vsel %vm57, %v139, 0.0
    %142 = vadd.xlane.f32.xlu0 %v141
    %v143 = vpop.xlane.xlu0 %142
    %v144 = vsel %vm57, %v140, 0.0
    %145 = vadd.xlane.f32.xlu0 %v144
    %v146 = vpop.xlane.xlu0 %145
    %v147 = vrcp.pop 32.0
    %v148 = vmul.f32 %v143, %v147
    %v149 = vmul.f32 %v146, %v147
    %v150 = vsub.f32 %v139, %v148
    %v151 = vsub.f32 %v140, %v149
    %v152 = vmul.f32 %v150, %v150
    %v153 = vmul.f32 %v151, %v151
    %v154 = vsel %vm57, %v152, 0.0
    %155 = vadd.xlane.f32.xlu0 %v154
    %v156 = vpop.xlane.xlu0 %155
    %v157 = vsel %vm57, %v153, 0.0
    %158 = vadd.xlane.f32.xlu0 %v157
    %v159 = vpop.xlane.xlu0 %158
    %v160 = vmul.f32 %v156, %v147
    %v161 = vmul.f32 %v159, %v147
    %v162 = vadd.f32 %v160, 1e-05
    %v163 = vadd.f32 %v161, 1e-05
    %v164 = vrsqrt.pop %v162
    %v165 = vrsqrt.pop %v163
    %v166 = vmul.f32 %v150, %v164
    %v167 = vmul.f32 %v151, %v165
    %v168 = vld [vmem:[%s4] sm:$0x1]
    %v170 = vlaneseq
    %v171 = vshrl.u32 %v170, 7
    %v172 = vsub.s32 0, %v171
    %v173 = vrot.slane %v168, %v172
    %v175 = vmul.f32 %v166, %v173
    %v176 = vmul.f32 %v167, %v173
    %v177 = vld [vmem:[%s5] sm:$0x1]
    %v179 = vlaneseq
    %v180 = vshrl.u32 %v179, 7
    %v181 = vsub.s32 0, %v180
    %v182 = vrot.slane %v177, %v181
    %v184 = vadd.f32 %v175, %v182
    %v185 = vadd.f32 %v176, %v182
    %v186 = vld [vmem:[%s6] sm:$0xff]
    %v187 = vld [vmem:[%s6 + $0x8] sm:$0xff]
    %v188 = vld [vmem:[%s6 + $0x10] sm:$0xff]
    %v189 = vld [vmem:[%s6 + $0x18] sm:$0xff]
    %v190 = vld [vmem:[%s7] sm:$0x1]
    %v192 = vlaneseq
    %v193 = vshrl.u32 %v192, 7
    %v194 = vsub.s32 0, %v193
    %v195 = vrot.slane %v190, %v194
    %v198 = vsel %vm57, %v184, 0
    %v201 = vsel %vm57, %v185, 0
    %203 = vmatprep.subr.mxu0 0.0
    %204 = vmatpush1.msra.mxu0 %v186
    %205 = vmatprep.subr.mxu0 0.0
    %206 = vmatpush1.msra.mxu0 %v187
    %207 = vmatprep.subr.mxu0 0.0
    %208 = vmatpush1.msra.mxu0 %v188
    %209 = vmatprep.subr.mxu0 0.0
    %210 = vmatpush1.msra.mxu0 %v189
    %211 = vmatprep.subr.mxu0 0.0
    %212 = vmatpush1.msra.mxu0 0.0
    %213 = vmatprep.subr.mxu0 0.0
    %214 = vmatpush1.msra.mxu0 0.0
    %215 = vmatprep.subr.mxu0 0.0
    %216 = vmatpush1.msra.mxu0 0.0
    %217 = vmatprep.subr.mxu0 0.0
    %218 = vmatpush1.msra.mxu0 0.0
    %219 = vmatprep.subr.mxu0 0.0
    %220 = vmatpush1.msra.mxu0 0.0
    %221 = vmatprep.subr.mxu0 0.0
    %222 = vmatpush1.msra.mxu0 0.0
    %223 = vmatprep.subr.mxu0 0.0
    %224 = vmatpush1.msra.mxu0 0.0
    %225 = vmatprep.subr.mxu0 0.0
    %226 = vmatpush1.msra.mxu0 0.0
    %227 = vmatprep.subr.mxu0 0.0
    %228 = vmatpush1.msra.mxu0 0.0
    %229 = vmatprep.subr.mxu0 0.0
    %230 = vmatpush1.msra.mxu0 0.0
    %231 = vmatprep.subr.mxu0 0.0
    %232 = vmatpush1.msra.mxu0 0.0
    %233 = vmatprep.subr.mxu0 0.0
    %234 = vmatpush1.msra.mxu0 0.0
    %235 = vmatprep.subr.mxu0 0.0
    %236 = vmatpush1.msra.mxu0 0.0
    %237 = vmatprep.subr.mxu0 0.0
    %238 = vmatpush1.msra.mxu0 0.0
    %239 = vmatprep.subr.mxu0 0.0
    %240 = vmatpush1.msra.mxu0 0.0
    %241 = vmatprep.subr.mxu0 0.0
    %242 = vmatpush1.msra.mxu0 0.0
    %243 = vmatprep.subr.mxu0 0.0
    %244 = vmatpush1.msra.mxu0 0.0
    %245 = vmatprep.subr.mxu0 0.0
    %246 = vmatpush1.msra.mxu0 0.0
    %247 = vmatprep.subr.mxu0 0.0
    %248 = vmatpush1.msra.mxu0 0.0
    %249 = vmatprep.subr.mxu0 0.0
    %250 = vmatpush1.msra.mxu0 0.0
    %251 = vmatprep.subr.mxu0 0.0
    %252 = vmatpush1.msra.mxu0 0.0
    %253 = vmatprep.subr.mxu0 0.0
    %254 = vmatpush1.msra.mxu0 0.0
    %255 = vmatprep.subr.mxu0 0.0
    %256 = vmatpush1.msra.mxu0 0.0
    %257 = vmatprep.subr.mxu0 0.0
    %258 = vmatpush1.msra.mxu0 0.0
    %259 = vmatprep.subr.mxu0 0.0
    %260 = vmatpush1.msra.mxu0 0.0
    %261 = vmatprep.subr.mxu0 0.0
    %262 = vmatpush1.msra.mxu0 0.0
    %263 = vmatprep.subr.mxu0 0.0
    %264 = vmatpush1.msra.mxu0 0.0
    %265 = vmatprep.subr.mxu0 0.0
    %266 = vmatpush1.msra.mxu0 0.0
    %267 = vmatprep.mubr.f32.mxu0 0.0
    %268 = vmatmul.mubr.f32.gmra.mrb[0].mxu0 %v198
    %v269 = vpop.f32.mrb[0].mxu0
    %v270 = vadd.f32 %v195, %v269
    %v271 = vpop.f32.mrb[0].mxu0
    %272 = vmatprep.mubr.f32.mxu0 0.0
    %273 = vmatmul.mubr.f32.gmra.mrb[0].mxu0 %v201
    %v274 = vpop.f32.mrb[0].mxu0
    %v275 = vadd.f32 %v195, %v274
    %v276 = vpop.f32.mrb[0].mxu0
    %277 = vdwg.mxu0
    %v278 = vmax.f32 %v270, 0.0
    %v279 = vmax.f32 %v275, 0.0
    %v280 = vld [vmem:[%s8] sm:$0xff]
    %v281 = vld [vmem:[%s8 + $0x8] sm:$0xff]
    %v282 = vld [vmem:[%s8 + $0x10] sm:$0xff]
    %v283 = vld [vmem:[%s8 + $0x18] sm:$0xff]
    %v284 = vld [vmem:[%s8 + $0x20] sm:$0xff]
    %v285 = vld [vmem:[%s8 + $0x28] sm:$0xff]
    %v286 = vld [vmem:[%s8 + $0x30] sm:$0xff]
    %v287 = vld [vmem:[%s8 + $0x38] sm:$0xff]
    %v288 = vld [vmem:[%s9] sm:$0x1]
    %v290 = vlaneseq
    %v291 = vshrl.u32 %v290, 7
    %v292 = vsub.s32 0, %v291
    %v293 = vrot.slane %v288, %v292
    %vm295 = vcmask 523264
    %v297 = vsel %vm295, %v278, 0
    %v300 = vsel %vm295, %v279, 0
    %302 = vmatprep.subr.mxu0 0.0
    %303 = vmatpush1.msra.mxu0 %v280
    %304 = vmatprep.subr.mxu0 0.0
    %305 = vmatpush1.msra.mxu0 %v281
    %306 = vmatprep.subr.mxu0 0.0
    %307 = vmatpush1.msra.mxu0 %v282
    %308 = vmatprep.subr.mxu0 0.0
    %309 = vmatpush1.msra.mxu0 %v283
    %310 = vmatprep.subr.mxu0 0.0
    %311 = vmatpush1.msra.mxu0 %v284
    %312 = vmatprep.subr.mxu0 0.0
    %313 = vmatpush1.msra.mxu0 %v285
    %314 = vmatprep.subr.mxu0 0.0
    %315 = vmatpush1.msra.mxu0 %v286
    %316 = vmatprep.subr.mxu0 0.0
    %317 = vmatpush1.msra.mxu0 %v287
    %318 = vmatprep.subr.mxu0 0.0
    %319 = vmatpush1.msra.mxu0 0.0
    %320 = vmatprep.subr.mxu0 0.0
    %321 = vmatpush1.msra.mxu0 0.0
    %322 = vmatprep.subr.mxu0 0.0
    %323 = vmatpush1.msra.mxu0 0.0
    %324 = vmatprep.subr.mxu0 0.0
    %325 = vmatpush1.msra.mxu0 0.0
    %326 = vmatprep.subr.mxu0 0.0
    %327 = vmatpush1.msra.mxu0 0.0
    %328 = vmatprep.subr.mxu0 0.0
    %329 = vmatpush1.msra.mxu0 0.0
    %330 = vmatprep.subr.mxu0 0.0
    %331 = vmatpush1.msra.mxu0 0.0
    %332 = vmatprep.subr.mxu0 0.0
    %333 = vmatpush1.msra.mxu0 0.0
    %334 = vmatprep.subr.mxu0 0.0
    %335 = vmatpush1.msra.mxu0 0.0
    %336 = vmatprep.subr.mxu0 0.0
    %337 = vmatpush1.msra.mxu0 0.0
    %338 = vmatprep.subr.mxu0 0.0
    %339 = vmatpush1.msra.mxu0 0.0
    %340 = vmatprep.subr.mxu0 0.0
    %341 = vmatpush1.msra.mxu0 0.0
    %342 = vmatprep.subr.mxu0 0.0
    %343 = vmatpush1.msra.mxu0 0.0
    %344 = vmatprep.subr.mxu0 0.0
    %345 = vmatpush1.msra.mxu0 0.0
    %346 = vmatprep.subr.mxu0 0.0
    %347 = vmatpush1.msra.mxu0 0.0
    %348 = vmatprep.subr.mxu0 0.0
    %349 = vmatpush1.msra.mxu0 0.0
    %350 = vmatprep.subr.mxu0 0.0
    %351 = vmatpush1.msra.mxu0 0.0
    %352 = vmatprep.subr.mxu0 0.0
    %353 = vmatpush1.msra.mxu0 0.0
    %354 = vmatprep.subr.mxu0 0.0
    %355 = vmatpush1.msra.mxu0 0.0
    %356 = vmatprep.subr.mxu0 0.0
    %357 = vmatpush1.msra.mxu0 0.0
    %358 = vmatprep.subr.mxu0 0.0
    %359 = vmatpush1.msra.mxu0 0.0
    %360 = vmatprep.subr.mxu0 0.0
    %361 = vmatpush1.msra.mxu0 0.0
    %362 = vmatprep.subr.mxu0 0.0
    %363 = vmatpush1.msra.mxu0 0.0
    %364 = vmatprep.subr.mxu0 0.0
    %365 = vmatpush1.msra.mxu0 0.0
    %366 = vmatprep.mubr.f32.mxu0 0.0
    %367 = vmatmul.mubr.f32.gmra.mrb[0].mxu0 %v297
    %v368 = vpop.f32.mrb[0].mxu0
    %v369 = vadd.f32 %v293, %v368
    %v370 = vpop.f32.mrb[0].mxu0
    %371 = vmatprep.mubr.f32.mxu0 0.0
    %372 = vmatmul.mubr.f32.gmra.mrb[0].mxu0 %v300
    %v373 = vpop.f32.mrb[0].mxu0
    %v374 = vadd.f32 %v293, %v373
    %v375 = vpop.f32.mrb[0].mxu0
    %376 = vdwg.mxu0
    %v377 = vadd.f32 %v184, %v369
    %v378 = vadd.f32 %v185, %v374
    %v379 = vsel %vm57, %v377, 0.0
    %380 = vadd.xlane.f32.xlu0 %v379
    %v381 = vpop.xlane.xlu0 %380
    %v382 = vsel %vm57, %v378, 0.0
    %383 = vadd.xlane.f32.xlu0 %v382
    %v384 = vpop.xlane.xlu0 %383
    %v385 = vmul.f32 %v381, %v147
    %v386 = vmul.f32 %v384, %v147
    %v387 = vsub.f32 %v377, %v385
    %v388 = vsub.f32 %v378, %v386
    %v389 = vmul.f32 %v387, %v387
    %v390 = vmul.f32 %v388, %v388
    %v391 = vsel %vm57, %v389, 0.0
    %392 = vadd.xlane.f32.xlu0 %v391
    %v393 = vpop.xlane.xlu0 %392
    %v394 = vsel %vm57, %v390, 0.0
    %395 = vadd.xlane.f32.xlu0 %v394
    %v396 = vpop.xlane.xlu0 %395
    %v397 = vmul.f32 %v393, %v147
    %v398 = vmul.f32 %v396, %v147
    %v399 = vadd.f32 %v397, 1e-05
    %v400 = vadd.f32 %v398, 1e-05
    %v401 = vrsqrt.pop %v399
    %v402 = vrsqrt.pop %v400
    %v403 = vmul.f32 %v387, %v401
    %v404 = vmul.f32 %v388, %v402
    %v405 = vld [vmem:[%s10] sm:$0x1]
    %v407 = vlaneseq
    %v408 = vshrl.u32 %v407, 7
    %v409 = vsub.s32 0, %v408
    %v410 = vrot.slane %v405, %v409
    %v412 = vmul.f32 %v403, %v410
    %v413 = vmul.f32 %v404, %v410
    %v414 = vld [vmem:[%s11] sm:$0x1]
    %v416 = vlaneseq
    %v417 = vshrl.u32 %v416, 7
    %v418 = vsub.s32 0, %v417
    %v419 = vrot.slane %v414, %v418
    %v421 = vadd.f32 %v412, %v419
    %v422 = vadd.f32 %v413, %v419
    %423 = vst.msk [vmem:[#allocation2] sm:$0xff] %vm57, %v421
    %424 = vst.msk [vmem:[#allocation2 + $0x8] sm:$0xff] %vm57, %v422
    // Predicated region
    $region50: #{encoder_layer.5} parent=1 // pred_check
      _
    $region51: #{encoder_layer.5} parent=1 // pred_check_branch
      %426 = sbr.rel (0) target = $region53
    $region52: #{encoder_layer.5} parent=1 // pred_region
      %s428 = ssub.s32 256, 256
      %429 = vsyncadd [#allocation3], %s428
      %s430 = sshll.u32 [#allocation2], 4
      %s431 = int_to_ptr.vmem [resolvable:$true] %s430
      %436 = dma.vmem_to_hbm [thread:$0]  %s431, 256, %s12, [#allocation3], 128, 128, 8
    $region53: #{encoder_layer.5} parent=1 // pred_fallthru
      _
    // Predicated region
    $region54: #{encoder_layer.5} parent=1 // pred_check
      _
    $region55: #{encoder_layer.5} parent=1 // pred_check_branch
      %438 = sbr.rel (0) target = $region57
    $region56: #{encoder_layer.5} parent=1 // pred_region
      %439 = dma.done [#allocation3], 256
    $region57: #{encoder_layer.5} parent=1 // pred_fallthru
      _
    %440 = vsyncpa [#allocation3], 1

</llo_original>
